<compile_context>
chip_gen: v6e
topology: v6e:2x2x1
jax: 0.10.0
libtpu: 0.0.40
codegen_flags: <defaults>
</compile_context>

<pallas_src>
import jax
import jax.numpy as jnp
from jax import lax
from jax.experimental import pallas as pl
from jax.experimental.pallas import tpu as pltpu


# ---------------------------------------------------------------------------
# Pallas kernel: one (batch-block, time-chunk) grid step of the fused
# bidirectional LSTM.
# ---------------------------------------------------------------------------
def lstm_encoder_kernel(xf_ref, xb_ref, wihf_ref, wihb_ref, bf_ref, bb_ref,
                        whh_ref, out_ref,
                        gxf_ref, gxb_ref, hf_ref, hb_ref, cf_ref, cb_ref):
    TsBt, G = gxf_ref.shape              # G = 4*Hl (one direction's gates)
    Bt = out_ref.shape[0]                # batch tile (multiple of 8)
    Ts = TsBt // Bt                      # recurrence steps in this chunk
    Hl = G // 4                          # LSTM hidden size per direction
    t = pl.program_id(1)
    nT = pl.num_programs(1)

    # (1) Reset the carried recurrent state at the start of each batch block's
    #     sweep over the time grid.
    @pl.when(t == 0)
    def _init():
        hf_ref[...] = jnp.zeros_like(hf_ref)
        hb_ref[...] = jnp.zeros_like(hb_ref)
        cf_ref[...] = jnp.zeros_like(cf_ref)
        cb_ref[...] = jnp.zeros_like(cb_ref)

    # (2) Hoisted input projection for this chunk: ONE well-shaped MXU matmul
    #     per direction (bias folded in), instead of Ts tiny ones.
    #     xf_ref holds x chunk t (forward time order); xb_ref holds x chunk
    #     nT-1-t, whose rows feed the reverse direction at this grid step.
    xf = xf_ref[0, 0]                    # (Ts*Bt, H)
    xb = xb_ref[0, 0]                    # (Ts*Bt, H)
    gxf_ref[...] = (jnp.dot(xf, wihf_ref[...],
                            preferred_element_type=jnp.float32)
                    + bf_ref[...]).astype(gxf_ref.dtype)
    gxb_ref[...] = (jnp.dot(xb, wihb_ref[...],
                            preferred_element_type=jnp.float32)
                    + bb_ref[...]).astype(gxb_ref.dtype)

    # (3) Recurrent weight loaded once per grid step (resident across steps).
    whh = whh_ref[...]                   # (2*Hl, 8*Hl) block-diagonal

    # (4) Fused bidirectional recurrence over the chunk.  h/c are carried in
    #     f32; the matmul operands use whh's dtype (bf16 by default).
    def step(j, carry):
        h_f, h_b, c_f, c_b = carry                               # (Bt, Hl) f32
        h = jnp.concatenate([h_f, h_b], axis=-1).astype(whh.dtype)
        rec = jnp.dot(h, whh, preferred_element_type=jnp.float32)  # (Bt, 8*Hl)

        rowf = pl.multiple_of(j * Bt, Bt)
        rowb = pl.multiple_of((Ts - 1 - j) * Bt, Bt)
        gf = gxf_ref[pl.ds(rowf, Bt), :] + rec[:, :G]            # fwd gates
        gb = gxb_ref[pl.ds(rowb, Bt), :] + rec[:, G:]            # rev gates

        i_f = jax.nn.sigmoid(gf[:, 0 * Hl:1 * Hl])               # PyTorch order
        f_f = jax.nn.sigmoid(gf[:, 1 * Hl:2 * Hl])               # i, f, g, o
        g_f = jnp.tanh(gf[:, 2 * Hl:3 * Hl])
        o_f = jax.nn.sigmoid(gf[:, 3 * Hl:4 * Hl])
        i_b = jax.nn.sigmoid(gb[:, 0 * Hl:1 * Hl])
        f_b = jax.nn.sigmoid(gb[:, 1 * Hl:2 * Hl])
        g_b = jnp.tanh(gb[:, 2 * Hl:3 * Hl])
        o_b = jax.nn.sigmoid(gb[:, 3 * Hl:4 * Hl])

        c_f = f_f * c_f + i_f * g_f
        c_b = f_b * c_b + i_b * g_b
        h_f = o_f * jnp.tanh(c_f)
        h_b = o_b * jnp.tanh(c_b)
        return h_f, h_b, c_f, c_b

    carry0 = (hf_ref[...], hb_ref[...], cf_ref[...], cb_ref[...])
    h_f, h_b, c_f, c_b = lax.fori_loop(0, Ts, step, carry0,
                                       unroll=min(Ts, 8))

    # (5) Persist the state for the next time chunk of this batch block.
    hf_ref[...] = h_f
    hb_ref[...] = h_b
    cf_ref[...] = c_f
    cb_ref[...] = c_b

    # (6) After the last chunk, [h_fwd_final | h_rev_final] is exactly the
    #     'concat' fusion of the module's forward.
    @pl.when(t == nT - 1)
    def _finalize():
        out_ref[...] = jnp.concatenate([h_f, h_b], axis=-1).astype(out_ref.dtype)


# ---------------------------------------------------------------------------
# Wrapper.
# ---------------------------------------------------------------------------
def _largest_divisor_leq(n, cap):
    for d in range(min(n, cap), 0, -1):
        if n % d == 0:
            return d
    return 1


def lstm_encoder_forward(hidden_states, params, *,
                         matmul_dtype=jnp.bfloat16,
                         gx_dtype=jnp.float32,
                         time_tile=None, batch_tile=None):
    """hidden_states: (L, B, S, H) stacked last hidden states of the LM.

    params = (wih_f, whh_f, b_f, wih_b, whh_b, b_b): PyTorch gate order
    [i, f, g, o], weights pre-transposed to (in_dim, 4*Hl); biases (1, 4*Hl)
    already holding b_ih + b_hh.

    matmul_dtype=bf16 (default) feeds the MXU natively on v5e/v6e/v7x while
    keeping f32 accumulation and f32 h/c state; pass jnp.float32 for a
    bit-strict path.  gx_dtype=bf16 halves the largest per-chunk buffer (v7x).
    """
    L, B, S, H = hidden_states.shape
    wih_f, whh_f, b_f, wih_b, whh_b, b_b = params
    Hl = whh_f.shape[0]
    G = 4 * Hl

    # torch.stack(hidden_states[-N:]).mean(0) + batch-first -> time-major
    # transpose as cheap XLA ops (keeps the kernel's working set small).
    emb = jnp.mean(hidden_states.astype(jnp.float32), axis=0)    # (B, S, H)
    xs = jnp.transpose(emb, (1, 0, 2))                           # (S, B, H)

    # --- tiling -----------------------------------------------------------
    Ts = _largest_divisor_leq(S, 32) if time_tile is None else time_tile
    assert S % Ts == 0, (S, Ts)
    nT = S // Ts
    if batch_tile is None:
        batch_tile = min(128, ((B + 7) // 8) * 8)   # sublane-aligned tile
    Bt = batch_tile
    assert Bt % 8 == 0, Bt
    nB = (B + Bt - 1) // Bt
    B_pad = nB * Bt

    # Pad batch to the tile (padded rows are zeros; their outputs are sliced
    # away).  Pre-flatten each (time-chunk, batch-block) into a 2-D slab so no
    # in-kernel reshapes are needed: row ordering inside a block is
    # j*Bt + b_local  <->  timestep t*Ts + j, batch b*Bt + b_local.
    if B_pad > B:
        xs = jnp.pad(xs, ((0, 0), (0, B_pad - B), (0, 0)))
    x_blocks = (xs.reshape(nT, Ts, nB, Bt, H)
                  .transpose(2, 0, 1, 3, 4)
                  .reshape(nB, nT, Ts * Bt, H)
                  .astype(matmul_dtype))

    # Weights: per-direction input projections (no zero blocks, no x
    # duplication) + fused block-diagonal recurrent matrix (K = 2*Hl).
    wih_f_c = wih_f.astype(matmul_dtype)                          # (H, 4*Hl)
    wih_b_c = wih_b.astype(matmul_dtype)                          # (H, 4*Hl)
    z = jnp.zeros((Hl, G), jnp.float32)
    whh_big = jnp.concatenate(
        [jnp.concatenate([whh_f, z], axis=1),
         jnp.concatenate([z, whh_b], axis=1)], axis=0).astype(matmul_dtype)
    b_f32 = b_f.astype(jnp.float32)                               # (1, 4*Hl)
    b_b32 = b_b.astype(jnp.float32)                               # (1, 4*Hl)

    grid = (nB, nT)
    in_specs = [
        # forward-time chunk t of x
        pl.BlockSpec((1, 1, Ts * Bt, H), lambda b, t: (b, t, 0, 0)),
        # the chunk feeding the reverse direction at grid step t
        pl.BlockSpec((1, 1, Ts * Bt, H), lambda b, t: (b, nT - 1 - t, 0, 0)),
        pl.BlockSpec((H, G), lambda b, t: (0, 0)),            # W_ih fwd
        pl.BlockSpec((H, G), lambda b, t: (0, 0)),            # W_ih rev
        pl.BlockSpec((1, G), lambda b, t: (0, 0)),            # bias fwd
        pl.BlockSpec((1, G), lambda b, t: (0, 0)),            # bias rev
        pl.BlockSpec((2 * Hl, 2 * G), lambda b, t: (0, 0)),   # W_hh block-diag
    ]
    out_specs = pl.BlockSpec((Bt, 2 * Hl), lambda b, t: (b, 0))
    scratch_shapes = [
        pltpu.VMEM((Ts * Bt, G), gx_dtype),      # fwd gate pre-activations
        pltpu.VMEM((Ts * Bt, G), gx_dtype),      # rev gate pre-activations
        pltpu.VMEM((Bt, Hl), jnp.float32),       # h forward (carried)
        pltpu.VMEM((Bt, Hl), jnp.float32),       # h reverse (carried)
        pltpu.VMEM((Bt, Hl), jnp.float32),       # c forward (carried)
        pltpu.VMEM((Bt, Hl), jnp.float32),       # c reverse (carried)
    ]

    out = pl.pallas_call(
        lstm_encoder_kernel,
        out_shape=jax.ShapeDtypeStruct((B_pad, 2 * Hl), jnp.float32),
        grid_spec=pltpu.PrefetchScalarGridSpec(
            num_scalar_prefetch=0,
            grid=grid,
            in_specs=in_specs,
            out_specs=out_specs,
            scratch_shapes=scratch_shapes),
        compiler_params=pltpu.CompilerParams(
            dimension_semantics=("parallel", "arbitrary"),
            vmem_limit_bytes=64 * 1024 * 1024),
    )(x_blocks, x_blocks, wih_f_c, wih_b_c, b_f32, b_b32, whh_big)

    return out[:B]


# ---------------------------------------------------------------------------
# Pure-JAX reference (matches torch semantics) for the correctness check.
# ---------------------------------------------------------------------------
def _lstm_cell_ref(x_t, h, c, wih, whh, b, Hl):
    gates = (jnp.dot(x_t, wih, preferred_element_type=jnp.float32)
             + jnp.dot(h, whh, preferred_element_type=jnp.float32)
             + b)
    i = jax.nn.sigmoid(gates[:, 0 * Hl:1 * Hl])
    f = jax.nn.sigmoid(gates[:, 1 * Hl:2 * Hl])
    g = jnp.tanh(gates[:, 2 * Hl:3 * Hl])
    o = jax.nn.sigmoid(gates[:, 3 * Hl:4 * Hl])
    c_new = f * c + i * g
    h_new = o * jnp.tanh(c_new)
    return h_new, c_new


def reference_forward(hidden_states, params):
    wih_f, whh_f, b_f, wih_b, whh_b, b_b = params
    Hl = whh_f.shape[0]
    emb = jnp.mean(hidden_states.astype(jnp.float32), axis=0)    # (B, S, H)
    xs = jnp.transpose(emb, (1, 0, 2))                           # (S, B, H)
    B = xs.shape[1]
    zeros = jnp.zeros((B, Hl), jnp.float32)

    def run(xs_dir, wih, whh, b):
        def step(carry, x_t):
            h, c = carry
            h, c = _lstm_cell_ref(x_t, h, c, wih, whh, b, Hl)
            return (h, c), None
        (h, _), _ = lax.scan(step, (zeros, zeros), xs_dir)
        return h

    h_f = run(xs, wih_f, whh_f, b_f)
    h_b = run(xs[::-1], wih_b, whh_b, b_b)
    return jnp.concatenate([h_f, h_b], axis=-1)


if __name__ == "__main__":
    # Small shapes consistent with the module's forward:
    #   model hidden size H=32, LSTM hidden Hl=2*H=64, batch B=2, seq S=8,
    #   model_hidden_states_num L=4.
    H, B, S, L = 32, 2, 8, 4
    Hl = 2 * H

    key = jax.random.PRNGKey(0)
    ks = jax.random.split(key, 9)
    bound = 1.0 / jnp.sqrt(jnp.float32(Hl))

    def u(k, shape):
        return jax.random.uniform(k, shape, jnp.float32, -bound, bound)

    # Forward / reverse direction LSTM params (PyTorch layout, pre-transposed).
    wih_f = u(ks[0], (H, 4 * Hl))
    whh_f = u(ks[1], (Hl, 4 * Hl))
    b_f = (u(ks[2], (4 * Hl,)) + u(ks[3], (4 * Hl,))).reshape(1, 4 * Hl)
    wih_b = u(ks[4], (H, 4 * Hl))
    whh_b = u(ks[5], (Hl, 4 * Hl))
    b_b = (u(ks[6], (4 * Hl,)) + u(ks[7], (4 * Hl,))).reshape(1, 4 * Hl)
    params = (wih_f, whh_f, b_f, wih_b, whh_b, b_b)

    # Synthetic "AutoModel" stacked hidden states: (L, B, S, H)
    hidden_states = jax.random.normal(ks[8], (L, B, S, H), jnp.float32)

    ref = reference_forward(hidden_states, params)

    # Default fast path: bf16 MXU operands, single time chunk.
    out_bf16 = jax.block_until_ready(lstm_encoder_forward(hidden_states, params))
    assert out_bf16.shape == (B, 4 * H), out_bf16.shape
    assert jnp.allclose(out_bf16, ref, atol=3e-2, rtol=3e-2), (
        float(jnp.max(jnp.abs(out_bf16 - ref))))

    # Streaming path: time axis split into chunks of 2 (exercises the grid and
    # the carried h/c scratch), still bf16.
    out_stream = jax.block_until_ready(
        lstm_encoder_forward(hidden_states, params, time_tile=2))
    assert jnp.allclose(out_stream, ref, atol=3e-2, rtol=3e-2), (
        float(jnp.max(jnp.abs(out_stream - ref))))

    # Strict-precision check on the f32 path (time-chunked as well).
    out_f32 = jax.block_until_ready(
        lstm_encoder_forward(hidden_states, params,
                             matmul_dtype=jnp.float32, time_tile=4))
    assert jnp.allclose(out_f32, ref, atol=2e-5, rtol=2e-5), (
        float(jnp.max(jnp.abs(out_f32 - ref))))

    print("KERNEL_OK")
</pallas_src>

<mosaic_0001>
module attributes {stable_mosaic.version = 11 : i64} {
  func.func @lstm_encoder_kernel(%arg0: i32, %arg1: i32, %arg2: memref<1x1x64x32xbf16, #tpu.memory_space<vmem>>, %arg3: memref<1x1x64x32xbf16, #tpu.memory_space<vmem>>, %arg4: memref<32x256xbf16, #tpu.memory_space<vmem>>, %arg5: memref<32x256xbf16, #tpu.memory_space<vmem>>, %arg6: memref<1x256xf32, #tpu.memory_space<vmem>>, %arg7: memref<1x256xf32, #tpu.memory_space<vmem>>, %arg8: memref<128x512xbf16, #tpu.memory_space<vmem>>, %arg9: memref<8x128xf32, #tpu.memory_space<vmem>>, %arg10: memref<64x256xf32, #tpu.memory_space<vmem>>, %arg11: memref<64x256xf32, #tpu.memory_space<vmem>>, %arg12: memref<8x64xf32, #tpu.memory_space<vmem>>, %arg13: memref<8x64xf32, #tpu.memory_space<vmem>>, %arg14: memref<8x64xf32, #tpu.memory_space<vmem>>, %arg15: memref<8x64xf32, #tpu.memory_space<vmem>>) attributes {dimension_semantics = [#tpu.dimension_semantics<parallel>, #tpu.dimension_semantics<arbitrary>], iteration_bounds = array<i64: 1, 1>, scalar_prefetch = 0 : i64, scratch_operands = 6 : i64, tpu.core_type = #tpu.core_type<tc>, window_params = [{transform_indices = @transform_0, window_bounds = array<i64: 1, 1, 64, 32>}, {transform_indices = @transform_1, window_bounds = array<i64: 1, 1, 64, 32>}, {pipeline_mode = #tpu.pipeline_mode<synchronous>, transform_indices = @transform_2, window_bounds = array<i64: 32, 256>}, {pipeline_mode = #tpu.pipeline_mode<synchronous>, transform_indices = @transform_3, window_bounds = array<i64: 32, 256>}, {pipeline_mode = #tpu.pipeline_mode<synchronous>, transform_indices = @transform_4, window_bounds = array<i64: 1, 256>}, {pipeline_mode = #tpu.pipeline_mode<synchronous>, transform_indices = @transform_5, window_bounds = array<i64: 1, 256>}, {pipeline_mode = #tpu.pipeline_mode<synchronous>, transform_indices = @transform_6, window_bounds = array<i64: 128, 512>}, {transform_indices = @transform_7, window_bounds = array<i64: 8, 128>}]} {
    %c0_i32 = arith.constant 0 : i32
    %0 = arith.cmpi eq, %arg1, %c0_i32 : i32
    %1 = arith.extui %0 : i1 to i32
    %c0_i32_0 = arith.constant 0 : i32
    %2 = arith.cmpi ne, %1, %c0_i32_0 : i32
    scf.if %2 {
      %cst_138 = arith.constant 0.000000e+00 : f32
      %559 = vector.broadcast %cst_138 : f32 to vector<8x64xf32>
      %c0_139 = arith.constant 0 : index
      %c0_140 = arith.constant 0 : index
      %560 = vector.load %arg12[%c0_139, %c0_140] : memref<8x64xf32, #tpu.memory_space<vmem>>, vector<8x64xf32>
      tpu.vector_store %arg12[%c0_139, %c0_140], %559 {strides = array<i32>} : memref<8x64xf32, #tpu.memory_space<vmem>>, vector<8x64xf32>,
      %cst_141 = arith.constant 0.000000e+00 : f32
      %561 = vector.broadcast %cst_141 : f32 to vector<8x64xf32>
      %c0_142 = arith.constant 0 : index
      %c0_143 = arith.constant 0 : index
      %562 = vector.load %arg13[%c0_142, %c0_143] : memref<8x64xf32, #tpu.memory_space<vmem>>, vector<8x64xf32>
      tpu.vector_store %arg13[%c0_142, %c0_143], %561 {strides = array<i32>} : memref<8x64xf32, #tpu.memory_space<vmem>>, vector<8x64xf32>,
      %cst_144 = arith.constant 0.000000e+00 : f32
      %563 = vector.broadcast %cst_144 : f32 to vector<8x64xf32>
      %c0_145 = arith.constant 0 : index
      %c0_146 = arith.constant 0 : index
      %564 = vector.load %arg14[%c0_145, %c0_146] : memref<8x64xf32, #tpu.memory_space<vmem>>, vector<8x64xf32>
      tpu.vector_store %arg14[%c0_145, %c0_146], %563 {strides = array<i32>} : memref<8x64xf32, #tpu.memory_space<vmem>>, vector<8x64xf32>,
      %cst_147 = arith.constant 0.000000e+00 : f32
      %565 = vector.broadcast %cst_147 : f32 to vector<8x64xf32>
      %c0_148 = arith.constant 0 : index
      %c0_149 = arith.constant 0 : index
      %566 = vector.load %arg15[%c0_148, %c0_149] : memref<8x64xf32, #tpu.memory_space<vmem>>, vector<8x64xf32>
      tpu.vector_store %arg15[%c0_148, %c0_149], %565 {strides = array<i32>} : memref<8x64xf32, #tpu.memory_space<vmem>>, vector<8x64xf32>,
    } else {
    }
    %c0 = arith.constant 0 : index
    %c0_1 = arith.constant 0 : index
    %c0_2 = arith.constant 0 : index
    %c0_3 = arith.constant 0 : index
    %3 = vector.load %arg2[%c0, %c0_1, %c0_2, %c0_3] : memref<1x1x64x32xbf16, #tpu.memory_space<vmem>>, vector<1x1x64x32xbf16>
    %4 = vector.shape_cast %3 : vector<1x1x64x32xbf16> to vector<64x32xbf16>
    %c0_4 = arith.constant 0 : index
    %c0_5 = arith.constant 0 : index
    %c0_6 = arith.constant 0 : index
    %c0_7 = arith.constant 0 : index
    %5 = vector.load %arg3[%c0_4, %c0_5, %c0_6, %c0_7] : memref<1x1x64x32xbf16, #tpu.memory_space<vmem>>, vector<1x1x64x32xbf16>
    %6 = vector.shape_cast %5 : vector<1x1x64x32xbf16> to vector<64x32xbf16>
    %c0_8 = arith.constant 0 : index
    %c0_9 = arith.constant 0 : index
    %7 = vector.load %arg4[%c0_8, %c0_9] : memref<32x256xbf16, #tpu.memory_space<vmem>>, vector<32x256xbf16>
    %cst = arith.constant dense<0.000000e+00> : vector<64x256xf32>
    %8 = tpu.matmul %4, %7, %cst {dimension_numbers = #tpu.dot_dimension_numbers<[1], [0], [0], [1], [0, 0, 1, 1], [], []>} : vector<64x32xbf16>, vector<32x256xbf16>, vector<64x256xf32> -> vector<64x256xf32>
    %c0_10 = arith.constant 0 : index
    %c0_11 = arith.constant 0 : index
    %9 = vector.load %arg6[%c0_10, %c0_11] : memref<1x256xf32, #tpu.memory_space<vmem>>, vector<1x256xf32>
    %10 = vector.broadcast %9 : vector<1x256xf32> to vector<64x256xf32>
    %11 = arith.addf %8, %10 : vector<64x256xf32>
    %c0_12 = arith.constant 0 : index
    %c0_13 = arith.constant 0 : index
    %12 = vector.load %arg10[%c0_12, %c0_13] : memref<64x256xf32, #tpu.memory_space<vmem>>, vector<64x256xf32>
    tpu.vector_store %arg10[%c0_12, %c0_13], %11 {strides = array<i32>} : memref<64x256xf32, #tpu.memory_space<vmem>>, vector<64x256xf32>,
    %c0_14 = arith.constant 0 : index
    %c0_15 = arith.constant 0 : index
    %13 = vector.load %arg5[%c0_14, %c0_15] : memref<32x256xbf16, #tpu.memory_space<vmem>>, vector<32x256xbf16>
    %cst_16 = arith.constant dense<0.000000e+00> : vector<64x256xf32>
    %14 = tpu.matmul %6, %13, %cst_16 {dimension_numbers = #tpu.dot_dimension_numbers<[1], [0], [0], [1], [0, 0, 1, 1], [], []>} : vector<64x32xbf16>, vector<32x256xbf16>, vector<64x256xf32> -> vector<64x256xf32>
    %c0_17 = arith.constant 0 : index
    %c0_18 = arith.constant 0 : index
    %15 = vector.load %arg7[%c0_17, %c0_18] : memref<1x256xf32, #tpu.memory_space<vmem>>, vector<1x256xf32>
    %16 = vector.broadcast %15 : vector<1x256xf32> to vector<64x256xf32>
    %17 = arith.addf %14, %16 : vector<64x256xf32>
    %c0_19 = arith.constant 0 : index
    %c0_20 = arith.constant 0 : index
    %18 = vector.load %arg11[%c0_19, %c0_20] : memref<64x256xf32, #tpu.memory_space<vmem>>, vector<64x256xf32>
    tpu.vector_store %arg11[%c0_19, %c0_20], %17 {strides = array<i32>} : memref<64x256xf32, #tpu.memory_space<vmem>>, vector<64x256xf32>,
    %c0_21 = arith.constant 0 : index
    %c0_22 = arith.constant 0 : index
    %19 = vector.load %arg8[%c0_21, %c0_22] : memref<128x512xbf16, #tpu.memory_space<vmem>>, vector<128x512xbf16>
    %c0_23 = arith.constant 0 : index
    %c0_24 = arith.constant 0 : index
    %20 = vector.load %arg12[%c0_23, %c0_24] : memref<8x64xf32, #tpu.memory_space<vmem>>, vector<8x64xf32>
    %c0_25 = arith.constant 0 : index
    %c0_26 = arith.constant 0 : index
    %21 = vector.load %arg13[%c0_25, %c0_26] : memref<8x64xf32, #tpu.memory_space<vmem>>, vector<8x64xf32>
    %c0_27 = arith.constant 0 : index
    %c0_28 = arith.constant 0 : index
    %22 = vector.load %arg14[%c0_27, %c0_28] : memref<8x64xf32, #tpu.memory_space<vmem>>, vector<8x64xf32>
    %c0_29 = arith.constant 0 : index
    %c0_30 = arith.constant 0 : index
    %23 = vector.load %arg15[%c0_29, %c0_30] : memref<8x64xf32, #tpu.memory_space<vmem>>, vector<8x64xf32>
    %c0_i32_31 = arith.constant 0 : i32
    %24 = tpu.concatenate %20, %21 in 1 : vector<8x64xf32>, vector<8x64xf32> -> vector<8x128xf32>
    %25 = arith.truncf %24 : vector<8x128xf32> to vector<8x128xbf16>
    %cst_32 = arith.constant dense<0.000000e+00> : vector<8x512xf32>
    %26 = tpu.matmul %25, %19, %cst_32 {dimension_numbers = #tpu.dot_dimension_numbers<[1], [0], [0], [1], [0, 0, 1, 1], [], []>} : vector<8x128xbf16>, vector<128x512xbf16>, vector<8x512xf32> -> vector<8x512xf32>
    %c8_i32 = arith.constant 8 : i32
    %27 = arith.muli %c0_i32_31, %c8_i32 : i32
    %28 = tpu.assume_multiple %27, 8 : i32
    %c7_i32 = arith.constant 7 : i32
    %29 = arith.subi %c7_i32, %c0_i32_31 : i32
    %c8_i32_33 = arith.constant 8 : i32
    %30 = arith.muli %29, %c8_i32_33 : i32
    %31 = tpu.assume_multiple %30, 8 : i32
    %32 = arith.index_cast %28 : i32 to index
    %c0_34 = arith.constant 0 : index
    %33 = vector.load %arg10[%32, %c0_34] : memref<64x256xf32, #tpu.memory_space<vmem>>, vector<8x256xf32>
    %34 = vector.extract_strided_slice %26 {offsets = [0, 0], sizes = [8, 256], strides = [1, 1]} : vector<8x512xf32> to vector<8x256xf32>
    %35 = arith.addf %33, %34 : vector<8x256xf32>
    %36 = arith.index_cast %31 : i32 to index
    %c0_35 = arith.constant 0 : index
    %37 = vector.load %arg11[%36, %c0_35] : memref<64x256xf32, #tpu.memory_space<vmem>>, vector<8x256xf32>
    %38 = vector.extract_strided_slice %26 {offsets = [0, 256], sizes = [8, 256], strides = [1, 1]} : vector<8x512xf32> to vector<8x256xf32>
    %39 = arith.addf %37, %38 : vector<8x256xf32>
    %40 = vector.extract_strided_slice %35 {offsets = [0, 0], sizes = [8, 64], strides = [1, 1]} : vector<8x256xf32> to vector<8x64xf32>
    %41 = arith.negf %40 : vector<8x64xf32>
    %42 = math.exp %41 : vector<8x64xf32>
    %cst_36 = arith.constant 1.000000e+00 : f32
    %43 = vector.broadcast %cst_36 : f32 to vector<8x64xf32>
    %44 = arith.addf %43, %42 : vector<8x64xf32>
    %45 = arith.divf %43, %44 : vector<8x64xf32>
    %46 = vector.extract_strided_slice %35 {offsets = [0, 64], sizes = [8, 64], strides = [1, 1]} : vector<8x256xf32> to vector<8x64xf32>
    %47 = arith.negf %46 : vector<8x64xf32>
    %48 = math.exp %47 : vector<8x64xf32>
    %cst_37 = arith.constant 1.000000e+00 : f32
    %49 = vector.broadcast %cst_37 : f32 to vector<8x64xf32>
    %50 = arith.addf %49, %48 : vector<8x64xf32>
    %51 = arith.divf %49, %50 : vector<8x64xf32>
    %52 = vector.extract_strided_slice %35 {offsets = [0, 128], sizes = [8, 64], strides = [1, 1]} : vector<8x256xf32> to vector<8x64xf32>
    %53 = math.tanh %52 : vector<8x64xf32>
    %54 = vector.extract_strided_slice %35 {offsets = [0, 192], sizes = [8, 64], strides = [1, 1]} : vector<8x256xf32> to vector<8x64xf32>
    %55 = arith.negf %54 : vector<8x64xf32>
    %56 = math.exp %55 : vector<8x64xf32>
    %cst_38 = arith.constant 1.000000e+00 : f32
    %57 = vector.broadcast %cst_38 : f32 to vector<8x64xf32>
    %58 = arith.addf %57, %56 : vector<8x64xf32>
    %59 = arith.divf %57, %58 : vector<8x64xf32>
    %60 = vector.extract_strided_slice %39 {offsets = [0, 0], sizes = [8, 64], strides = [1, 1]} : vector<8x256xf32> to vector<8x64xf32>
    %61 = arith.negf %60 : vector<8x64xf32>
    %62 = math.exp %61 : vector<8x64xf32>
    %cst_39 = arith.constant 1.000000e+00 : f32
    %63 = vector.broadcast %cst_39 : f32 to vector<8x64xf32>
    %64 = arith.addf %63, %62 : vector<8x64xf32>
    %65 = arith.divf %63, %64 : vector<8x64xf32>
    %66 = vector.extract_strided_slice %39 {offsets = [0, 64], sizes = [8, 64], strides = [1, 1]} : vector<8x256xf32> to vector<8x64xf32>
    %67 = arith.negf %66 : vector<8x64xf32>
    %68 = math.exp %67 : vector<8x64xf32>
    %cst_40 = arith.constant 1.000000e+00 : f32
    %69 = vector.broadcast %cst_40 : f32 to vector<8x64xf32>
    %70 = arith.addf %69, %68 : vector<8x64xf32>
    %71 = arith.divf %69, %70 : vector<8x64xf32>
    %72 = vector.extract_strided_slice %39 {offsets = [0, 128], sizes = [8, 64], strides = [1, 1]} : vector<8x256xf32> to vector<8x64xf32>
    %73 = math.tanh %72 : vector<8x64xf32>
    %74 = vector.extract_strided_slice %39 {offsets = [0, 192], sizes = [8, 64], strides = [1, 1]} : vector<8x256xf32> to vector<8x64xf32>
    %75 = arith.negf %74 : vector<8x64xf32>
    %76 = math.exp %75 : vector<8x64xf32>
    %cst_41 = arith.constant 1.000000e+00 : f32
    %77 = vector.broadcast %cst_41 : f32 to vector<8x64xf32>
    %78 = arith.addf %77, %76 : vector<8x64xf32>
    %79 = arith.divf %77, %78 : vector<8x64xf32>
    %80 = arith.mulf %51, %22 : vector<8x64xf32>
    %81 = arith.mulf %45, %53 : vector<8x64xf32>
    %82 = arith.addf %80, %81 : vector<8x64xf32>
    %83 = arith.mulf %71, %23 : vector<8x64xf32>
    %84 = arith.mulf %65, %73 : vector<8x64xf32>
    %85 = arith.addf %83, %84 : vector<8x64xf32>
    %86 = math.tanh %82 : vector<8x64xf32>
    %87 = arith.mulf %59, %86 : vector<8x64xf32>
    %88 = math.tanh %85 : vector<8x64xf32>
    %89 = arith.mulf %79, %88 : vector<8x64xf32>
    %c1_i32 = arith.constant 1 : i32
    %90 = tpu.concatenate %87, %89 in 1 : vector<8x64xf32>, vector<8x64xf32> -> vector<8x128xf32>
    %91 = arith.truncf %90 : vector<8x128xf32> to vector<8x128xbf16>
    %cst_42 = arith.constant dense<0.000000e+00> : vector<8x512xf32>
    %92 = tpu.matmul %91, %19, %cst_42 {dimension_numbers = #tpu.dot_dimension_numbers<[1], [0], [0], [1], [0, 0, 1, 1], [], []>} : vector<8x128xbf16>, vector<128x512xbf16>, vector<8x512xf32> -> vector<8x512xf32>
    %c8_i32_43 = arith.constant 8 : i32
    %93 = arith.muli %c1_i32, %c8_i32_43 : i32
    %94 = tpu.assume_multiple %93, 8 : i32
    %c7_i32_44 = arith.constant 7 : i32
    %95 = arith.subi %c7_i32_44, %c1_i32 : i32
    %c8_i32_45 = arith.constant 8 : i32
    %96 = arith.muli %95, %c8_i32_45 : i32
    %97 = tpu.assume_multiple %96, 8 : i32
    %98 = arith.index_cast %94 : i32 to index
    %c0_46 = arith.constant 0 : index
    %99 = vector.load %arg10[%98, %c0_46] : memref<64x256xf32, #tpu.memory_space<vmem>>, vector<8x256xf32>
    %100 = vector.extract_strided_slice %92 {offsets = [0, 0], sizes = [8, 256], strides = [1, 1]} : vector<8x512xf32> to vector<8x256xf32>
    %101 = arith.addf %99, %100 : vector<8x256xf32>
    %102 = arith.index_cast %97 : i32 to index
    %c0_47 = arith.constant 0 : index
    %103 = vector.load %arg11[%102, %c0_47] : memref<64x256xf32, #tpu.memory_space<vmem>>, vector<8x256xf32>
    %104 = vector.extract_strided_slice %92 {offsets = [0, 256], sizes = [8, 256], strides = [1, 1]} : vector<8x512xf32> to vector<8x256xf32>
    %105 = arith.addf %103, %104 : vector<8x256xf32>
    %106 = vector.extract_strided_slice %101 {offsets = [0, 0], sizes = [8, 64], strides = [1, 1]} : vector<8x256xf32> to vector<8x64xf32>
    %107 = arith.negf %106 : vector<8x64xf32>
    %108 = math.exp %107 : vector<8x64xf32>
    %cst_48 = arith.constant 1.000000e+00 : f32
    %109 = vector.broadcast %cst_48 : f32 to vector<8x64xf32>
    %110 = arith.addf %109, %108 : vector<8x64xf32>
    %111 = arith.divf %109, %110 : vector<8x64xf32>
    %112 = vector.extract_strided_slice %101 {offsets = [0, 64], sizes = [8, 64], strides = [1, 1]} : vector<8x256xf32> to vector<8x64xf32>
    %113 = arith.negf %112 : vector<8x64xf32>
    %114 = math.exp %113 : vector<8x64xf32>
    %cst_49 = arith.constant 1.000000e+00 : f32
    %115 = vector.broadcast %cst_49 : f32 to vector<8x64xf32>
    %116 = arith.addf %115, %114 : vector<8x64xf32>
    %117 = arith.divf %115, %116 : vector<8x64xf32>
    %118 = vector.extract_strided_slice %101 {offsets = [0, 128], sizes = [8, 64], strides = [1, 1]} : vector<8x256xf32> to vector<8x64xf32>
    %119 = math.tanh %118 : vector<8x64xf32>
    %120 = vector.extract_strided_slice %101 {offsets = [0, 192], sizes = [8, 64], strides = [1, 1]} : vector<8x256xf32> to vector<8x64xf32>
    %121 = arith.negf %120 : vector<8x64xf32>
    %122 = math.exp %121 : vector<8x64xf32>
    %cst_50 = arith.constant 1.000000e+00 : f32
    %123 = vector.broadcast %cst_50 : f32 to vector<8x64xf32>
    %124 = arith.addf %123, %122 : vector<8x64xf32>
    %125 = arith.divf %123, %124 : vector<8x64xf32>
    %126 = vector.extract_strided_slice %105 {offsets = [0, 0], sizes = [8, 64], strides = [1, 1]} : vector<8x256xf32> to vector<8x64xf32>
    %127 = arith.negf %126 : vector<8x64xf32>
    %128 = math.exp %127 : vector<8x64xf32>
    %cst_51 = arith.constant 1.000000e+00 : f32
    %129 = vector.broadcast %cst_51 : f32 to vector<8x64xf32>
    %130 = arith.addf %129, %128 : vector<8x64xf32>
    %131 = arith.divf %129, %130 : vector<8x64xf32>
    %132 = vector.extract_strided_slice %105 {offsets = [0, 64], sizes = [8, 64], strides = [1, 1]} : vector<8x256xf32> to vector<8x64xf32>
    %133 = arith.negf %132 : vector<8x64xf32>
    %134 = math.exp %133 : vector<8x64xf32>
    %cst_52 = arith.constant 1.000000e+00 : f32
    %135 = vector.broadcast %cst_52 : f32 to vector<8x64xf32>
    %136 = arith.addf %135, %134 : vector<8x64xf32>
    %137 = arith.divf %135, %136 : vector<8x64xf32>
    %138 = vector.extract_strided_slice %105 {offsets = [0, 128], sizes = [8, 64], strides = [1, 1]} : vector<8x256xf32> to vector<8x64xf32>
    %139 = math.tanh %138 : vector<8x64xf32>
    %140 = vector.extract_strided_slice %105 {offsets = [0, 192], sizes = [8, 64], strides = [1, 1]} : vector<8x256xf32> to vector<8x64xf32>
    %141 = arith.negf %140 : vector<8x64xf32>
    %142 = math.exp %141 : vector<8x64xf32>
    %cst_53 = arith.constant 1.000000e+00 : f32
    %143 = vector.broadcast %cst_53 : f32 to vector<8x64xf32>
    %144 = arith.addf %143, %142 : vector<8x64xf32>
    %145 = arith.divf %143, %144 : vector<8x64xf32>
    %146 = arith.mulf %117, %82 : vector<8x64xf32>
    %147 = arith.mulf %111, %119 : vector<8x64xf32>
    %148 = arith.addf %146, %147 : vector<8x64xf32>
    %149 = arith.mulf %137, %85 : vector<8x64xf32>
    %150 = arith.mulf %131, %139 : vector<8x64xf32>
    %151 = arith.addf %149, %150 : vector<8x64xf32>
    %152 = math.tanh %148 : vector<8x64xf32>
    %153 = arith.mulf %125, %152 : vector<8x64xf32>
    %154 = math.tanh %151 : vector<8x64xf32>
    %155 = arith.mulf %145, %154 : vector<8x64xf32>
    %c2_i32 = arith.constant 2 : i32
    %156 = tpu.concatenate %153, %155 in 1 : vector<8x64xf32>, vector<8x64xf32> -> vector<8x128xf32>
    %157 = arith.truncf %156 : vector<8x128xf32> to vector<8x128xbf16>
    %cst_54 = arith.constant dense<0.000000e+00> : vector<8x512xf32>
    %158 = tpu.matmul %157, %19, %cst_54 {dimension_numbers = #tpu.dot_dimension_numbers<[1], [0], [0], [1], [0, 0, 1, 1], [], []>} : vector<8x128xbf16>, vector<128x512xbf16>, vector<8x512xf32> -> vector<8x512xf32>
    %c8_i32_55 = arith.constant 8 : i32
    %159 = arith.muli %c2_i32, %c8_i32_55 : i32
    %160 = tpu.assume_multiple %159, 8 : i32
    %c7_i32_56 = arith.constant 7 : i32
    %161 = arith.subi %c7_i32_56, %c2_i32 : i32
    %c8_i32_57 = arith.constant 8 : i32
    %162 = arith.muli %161, %c8_i32_57 : i32
    %163 = tpu.assume_multiple %162, 8 : i32
    %164 = arith.index_cast %160 : i32 to index
    %c0_58 = arith.constant 0 : index
    %165 = vector.load %arg10[%164, %c0_58] : memref<64x256xf32, #tpu.memory_space<vmem>>, vector<8x256xf32>
    %166 = vector.extract_strided_slice %158 {offsets = [0, 0], sizes = [8, 256], strides = [1, 1]} : vector<8x512xf32> to vector<8x256xf32>
    %167 = arith.addf %165, %166 : vector<8x256xf32>
    %168 = arith.index_cast %163 : i32 to index
    %c0_59 = arith.constant 0 : index
    %169 = vector.load %arg11[%168, %c0_59] : memref<64x256xf32, #tpu.memory_space<vmem>>, vector<8x256xf32>
    %170 = vector.extract_strided_slice %158 {offsets = [0, 256], sizes = [8, 256], strides = [1, 1]} : vector<8x512xf32> to vector<8x256xf32>
    %171 = arith.addf %169, %170 : vector<8x256xf32>
    %172 = vector.extract_strided_slice %167 {offsets = [0, 0], sizes = [8, 64], strides = [1, 1]} : vector<8x256xf32> to vector<8x64xf32>
    %173 = arith.negf %172 : vector<8x64xf32>
    %174 = math.exp %173 : vector<8x64xf32>
    %cst_60 = arith.constant 1.000000e+00 : f32
    %175 = vector.broadcast %cst_60 : f32 to vector<8x64xf32>
    %176 = arith.addf %175, %174 : vector<8x64xf32>
    %177 = arith.divf %175, %176 : vector<8x64xf32>
    %178 = vector.extract_strided_slice %167 {offsets = [0, 64], sizes = [8, 64], strides = [1, 1]} : vector<8x256xf32> to vector<8x64xf32>
    %179 = arith.negf %178 : vector<8x64xf32>
    %180 = math.exp %179 : vector<8x64xf32>
    %cst_61 = arith.constant 1.000000e+00 : f32
    %181 = vector.broadcast %cst_61 : f32 to vector<8x64xf32>
    %182 = arith.addf %181, %180 : vector<8x64xf32>
    %183 = arith.divf %181, %182 : vector<8x64xf32>
    %184 = vector.extract_strided_slice %167 {offsets = [0, 128], sizes = [8, 64], strides = [1, 1]} : vector<8x256xf32> to vector<8x64xf32>
    %185 = math.tanh %184 : vector<8x64xf32>
    %186 = vector.extract_strided_slice %167 {offsets = [0, 192], sizes = [8, 64], strides = [1, 1]} : vector<8x256xf32> to vector<8x64xf32>
    %187 = arith.negf %186 : vector<8x64xf32>
    %188 = math.exp %187 : vector<8x64xf32>
    %cst_62 = arith.constant 1.000000e+00 : f32
    %189 = vector.broadcast %cst_62 : f32 to vector<8x64xf32>
    %190 = arith.addf %189, %188 : vector<8x64xf32>
    %191 = arith.divf %189, %190 : vector<8x64xf32>
    %192 = vector.extract_strided_slice %171 {offsets = [0, 0], sizes = [8, 64], strides = [1, 1]} : vector<8x256xf32> to vector<8x64xf32>
    %193 = arith.negf %192 : vector<8x64xf32>
    %194 = math.exp %193 : vector<8x64xf32>
    %cst_63 = arith.constant 1.000000e+00 : f32
    %195 = vector.broadcast %cst_63 : f32 to vector<8x64xf32>
    %196 = arith.addf %195, %194 : vector<8x64xf32>
    %197 = arith.divf %195, %196 : vector<8x64xf32>
    %198 = vector.extract_strided_slice %171 {offsets = [0, 64], sizes = [8, 64], strides = [1, 1]} : vector<8x256xf32> to vector<8x64xf32>
    %199 = arith.negf %198 : vector<8x64xf32>
    %200 = math.exp %199 : vector<8x64xf32>
    %cst_64 = arith.constant 1.000000e+00 : f32
    %201 = vector.broadcast %cst_64 : f32 to vector<8x64xf32>
    %202 = arith.addf %201, %200 : vector<8x64xf32>
    %203 = arith.divf %201, %202 : vector<8x64xf32>
    %204 = vector.extract_strided_slice %171 {offsets = [0, 128], sizes = [8, 64], strides = [1, 1]} : vector<8x256xf32> to vector<8x64xf32>
    %205 = math.tanh %204 : vector<8x64xf32>
    %206 = vector.extract_strided_slice %171 {offsets = [0, 192], sizes = [8, 64], strides = [1, 1]} : vector<8x256xf32> to vector<8x64xf32>
    %207 = arith.negf %206 : vector<8x64xf32>
    %208 = math.exp %207 : vector<8x64xf32>
    %cst_65 = arith.constant 1.000000e+00 : f32
    %209 = vector.broadcast %cst_65 : f32 to vector<8x64xf32>
    %210 = arith.addf %209, %208 : vector<8x64xf32>
    %211 = arith.divf %209, %210 : vector<8x64xf32>
    %212 = arith.mulf %183, %148 : vector<8x64xf32>
    %213 = arith.mulf %177, %185 : vector<8x64xf32>
    %214 = arith.addf %212, %213 : vector<8x64xf32>
    %215 = arith.mulf %203, %151 : vector<8x64xf32>
    %216 = arith.mulf %197, %205 : vector<8x64xf32>
    %217 = arith.addf %215, %216 : vector<8x64xf32>
    %218 = math.tanh %214 : vector<8x64xf32>
    %219 = arith.mulf %191, %218 : vector<8x64xf32>
    %220 = math.tanh %217 : vector<8x64xf32>
    %221 = arith.mulf %211, %220 : vector<8x64xf32>
    %c3_i32 = arith.constant 3 : i32
    %222 = tpu.concatenate %219, %221 in 1 : vector<8x64xf32>, vector<8x64xf32> -> vector<8x128xf32>
    %223 = arith.truncf %222 : vector<8x128xf32> to vector<8x128xbf16>
    %cst_66 = arith.constant dense<0.000000e+00> : vector<8x512xf32>
    %224 = tpu.matmul %223, %19, %cst_66 {dimension_numbers = #tpu.dot_dimension_numbers<[1], [0], [0], [1], [0, 0, 1, 1], [], []>} : vector<8x128xbf16>, vector<128x512xbf16>, vector<8x512xf32> -> vector<8x512xf32>
    %c8_i32_67 = arith.constant 8 : i32
    %225 = arith.muli %c3_i32, %c8_i32_67 : i32
    %226 = tpu.assume_multiple %225, 8 : i32
    %c7_i32_68 = arith.constant 7 : i32
    %227 = arith.subi %c7_i32_68, %c3_i32 : i32
    %c8_i32_69 = arith.constant 8 : i32
    %228 = arith.muli %227, %c8_i32_69 : i32
    %229 = tpu.assume_multiple %228, 8 : i32
    %230 = arith.index_cast %226 : i32 to index
    %c0_70 = arith.constant 0 : index
    %231 = vector.load %arg10[%230, %c0_70] : memref<64x256xf32, #tpu.memory_space<vmem>>, vector<8x256xf32>
    %232 = vector.extract_strided_slice %224 {offsets = [0, 0], sizes = [8, 256], strides = [1, 1]} : vector<8x512xf32> to vector<8x256xf32>
    %233 = arith.addf %231, %232 : vector<8x256xf32>
    %234 = arith.index_cast %229 : i32 to index
    %c0_71 = arith.constant 0 : index
    %235 = vector.load %arg11[%234, %c0_71] : memref<64x256xf32, #tpu.memory_space<vmem>>, vector<8x256xf32>
    %236 = vector.extract_strided_slice %224 {offsets = [0, 256], sizes = [8, 256], strides = [1, 1]} : vector<8x512xf32> to vector<8x256xf32>
    %237 = arith.addf %235, %236 : vector<8x256xf32>
    %238 = vector.extract_strided_slice %233 {offsets = [0, 0], sizes = [8, 64], strides = [1, 1]} : vector<8x256xf32> to vector<8x64xf32>
    %239 = arith.negf %238 : vector<8x64xf32>
    %240 = math.exp %239 : vector<8x64xf32>
    %cst_72 = arith.constant 1.000000e+00 : f32
    %241 = vector.broadcast %cst_72 : f32 to vector<8x64xf32>
    %242 = arith.addf %241, %240 : vector<8x64xf32>
    %243 = arith.divf %241, %242 : vector<8x64xf32>
    %244 = vector.extract_strided_slice %233 {offsets = [0, 64], sizes = [8, 64], strides = [1, 1]} : vector<8x256xf32> to vector<8x64xf32>
    %245 = arith.negf %244 : vector<8x64xf32>
    %246 = math.exp %245 : vector<8x64xf32>
    %cst_73 = arith.constant 1.000000e+00 : f32
    %247 = vector.broadcast %cst_73 : f32 to vector<8x64xf32>
    %248 = arith.addf %247, %246 : vector<8x64xf32>
    %249 = arith.divf %247, %248 : vector<8x64xf32>
    %250 = vector.extract_strided_slice %233 {offsets = [0, 128], sizes = [8, 64], strides = [1, 1]} : vector<8x256xf32> to vector<8x64xf32>
    %251 = math.tanh %250 : vector<8x64xf32>
    %252 = vector.extract_strided_slice %233 {offsets = [0, 192], sizes = [8, 64], strides = [1, 1]} : vector<8x256xf32> to vector<8x64xf32>
    %253 = arith.negf %252 : vector<8x64xf32>
    %254 = math.exp %253 : vector<8x64xf32>
    %cst_74 = arith.constant 1.000000e+00 : f32
    %255 = vector.broadcast %cst_74 : f32 to vector<8x64xf32>
    %256 = arith.addf %255, %254 : vector<8x64xf32>
    %257 = arith.divf %255, %256 : vector<8x64xf32>
    %258 = vector.extract_strided_slice %237 {offsets = [0, 0], sizes = [8, 64], strides = [1, 1]} : vector<8x256xf32> to vector<8x64xf32>
    %259 = arith.negf %258 : vector<8x64xf32>
    %260 = math.exp %259 : vector<8x64xf32>
    %cst_75 = arith.constant 1.000000e+00 : f32
    %261 = vector.broadcast %cst_75 : f32 to vector<8x64xf32>
    %262 = arith.addf %261, %260 : vector<8x64xf32>
    %263 = arith.divf %261, %262 : vector<8x64xf32>
    %264 = vector.extract_strided_slice %237 {offsets = [0, 64], sizes = [8, 64], strides = [1, 1]} : vector<8x256xf32> to vector<8x64xf32>
    %265 = arith.negf %264 : vector<8x64xf32>
    %266 = math.exp %265 : vector<8x64xf32>
    %cst_76 = arith.constant 1.000000e+00 : f32
    %267 = vector.broadcast %cst_76 : f32 to vector<8x64xf32>
    %268 = arith.addf %267, %266 : vector<8x64xf32>
    %269 = arith.divf %267, %268 : vector<8x64xf32>
    %270 = vector.extract_strided_slice %237 {offsets = [0, 128], sizes = [8, 64], strides = [1, 1]} : vector<8x256xf32> to vector<8x64xf32>
    %271 = math.tanh %270 : vector<8x64xf32>
    %272 = vector.extract_strided_slice %237 {offsets = [0, 192], sizes = [8, 64], strides = [1, 1]} : vector<8x256xf32> to vector<8x64xf32>
    %273 = arith.negf %272 : vector<8x64xf32>
    %274 = math.exp %273 : vector<8x64xf32>
    %cst_77 = arith.constant 1.000000e+00 : f32
    %275 = vector.broadcast %cst_77 : f32 to vector<8x64xf32>
    %276 = arith.addf %275, %274 : vector<8x64xf32>
    %277 = arith.divf %275, %276 : vector<8x64xf32>
    %278 = arith.mulf %249, %214 : vector<8x64xf32>
    %279 = arith.mulf %243, %251 : vector<8x64xf32>
    %280 = arith.addf %278, %279 : vector<8x64xf32>
    %281 = arith.mulf %269, %217 : vector<8x64xf32>
    %282 = arith.mulf %263, %271 : vector<8x64xf32>
    %283 = arith.addf %281, %282 : vector<8x64xf32>
    %284 = math.tanh %280 : vector<8x64xf32>
    %285 = arith.mulf %257, %284 : vector<8x64xf32>
    %286 = math.tanh %283 : vector<8x64xf32>
    %287 = arith.mulf %277, %286 : vector<8x64xf32>
    %c4_i32 = arith.constant 4 : i32
    %288 = tpu.concatenate %285, %287 in 1 : vector<8x64xf32>, vector<8x64xf32> -> vector<8x128xf32>
    %289 = arith.truncf %288 : vector<8x128xf32> to vector<8x128xbf16>
    %cst_78 = arith.constant dense<0.000000e+00> : vector<8x512xf32>
    %290 = tpu.matmul %289, %19, %cst_78 {dimension_numbers = #tpu.dot_dimension_numbers<[1], [0], [0], [1], [0, 0, 1, 1], [], []>} : vector<8x128xbf16>, vector<128x512xbf16>, vector<8x512xf32> -> vector<8x512xf32>
    %c8_i32_79 = arith.constant 8 : i32
    %291 = arith.muli %c4_i32, %c8_i32_79 : i32
    %292 = tpu.assume_multiple %291, 8 : i32
    %c7_i32_80 = arith.constant 7 : i32
    %293 = arith.subi %c7_i32_80, %c4_i32 : i32
    %c8_i32_81 = arith.constant 8 : i32
    %294 = arith.muli %293, %c8_i32_81 : i32
    %295 = tpu.assume_multiple %294, 8 : i32
    %296 = arith.index_cast %292 : i32 to index
    %c0_82 = arith.constant 0 : index
    %297 = vector.load %arg10[%296, %c0_82] : memref<64x256xf32, #tpu.memory_space<vmem>>, vector<8x256xf32>
    %298 = vector.extract_strided_slice %290 {offsets = [0, 0], sizes = [8, 256], strides = [1, 1]} : vector<8x512xf32> to vector<8x256xf32>
    %299 = arith.addf %297, %298 : vector<8x256xf32>
    %300 = arith.index_cast %295 : i32 to index
    %c0_83 = arith.constant 0 : index
    %301 = vector.load %arg11[%300, %c0_83] : memref<64x256xf32, #tpu.memory_space<vmem>>, vector<8x256xf32>
    %302 = vector.extract_strided_slice %290 {offsets = [0, 256], sizes = [8, 256], strides = [1, 1]} : vector<8x512xf32> to vector<8x256xf32>
    %303 = arith.addf %301, %302 : vector<8x256xf32>
    %304 = vector.extract_strided_slice %299 {offsets = [0, 0], sizes = [8, 64], strides = [1, 1]} : vector<8x256xf32> to vector<8x64xf32>
    %305 = arith.negf %304 : vector<8x64xf32>
    %306 = math.exp %305 : vector<8x64xf32>
    %cst_84 = arith.constant 1.000000e+00 : f32
    %307 = vector.broadcast %cst_84 : f32 to vector<8x64xf32>
    %308 = arith.addf %307, %306 : vector<8x64xf32>
    %309 = arith.divf %307, %308 : vector<8x64xf32>
    %310 = vector.extract_strided_slice %299 {offsets = [0, 64], sizes = [8, 64], strides = [1, 1]} : vector<8x256xf32> to vector<8x64xf32>
    %311 = arith.negf %310 : vector<8x64xf32>
    %312 = math.exp %311 : vector<8x64xf32>
    %cst_85 = arith.constant 1.000000e+00 : f32
    %313 = vector.broadcast %cst_85 : f32 to vector<8x64xf32>
    %314 = arith.addf %313, %312 : vector<8x64xf32>
    %315 = arith.divf %313, %314 : vector<8x64xf32>
    %316 = vector.extract_strided_slice %299 {offsets = [0, 128], sizes = [8, 64], strides = [1, 1]} : vector<8x256xf32> to vector<8x64xf32>
    %317 = math.tanh %316 : vector<8x64xf32>
    %318 = vector.extract_strided_slice %299 {offsets = [0, 192], sizes = [8, 64], strides = [1, 1]} : vector<8x256xf32> to vector<8x64xf32>
    %319 = arith.negf %318 : vector<8x64xf32>
    %320 = math.exp %319 : vector<8x64xf32>
    %cst_86 = arith.constant 1.000000e+00 : f32
    %321 = vector.broadcast %cst_86 : f32 to vector<8x64xf32>
    %322 = arith.addf %321, %320 : vector<8x64xf32>
    %323 = arith.divf %321, %322 : vector<8x64xf32>
    %324 = vector.extract_strided_slice %303 {offsets = [0, 0], sizes = [8, 64], strides = [1, 1]} : vector<8x256xf32> to vector<8x64xf32>
    %325 = arith.negf %324 : vector<8x64xf32>
    %326 = math.exp %325 : vector<8x64xf32>
    %cst_87 = arith.constant 1.000000e+00 : f32
    %327 = vector.broadcast %cst_87 : f32 to vector<8x64xf32>
    %328 = arith.addf %327, %326 : vector<8x64xf32>
    %329 = arith.divf %327, %328 : vector<8x64xf32>
    %330 = vector.extract_strided_slice %303 {offsets = [0, 64], sizes = [8, 64], strides = [1, 1]} : vector<8x256xf32> to vector<8x64xf32>
    %331 = arith.negf %330 : vector<8x64xf32>
    %332 = math.exp %331 : vector<8x64xf32>
    %cst_88 = arith.constant 1.000000e+00 : f32
    %333 = vector.broadcast %cst_88 : f32 to vector<8x64xf32>
    %334 = arith.addf %333, %332 : vector<8x64xf32>
    %335 = arith.divf %333, %334 : vector<8x64xf32>
    %336 = vector.extract_strided_slice %303 {offsets = [0, 128], sizes = [8, 64], strides = [1, 1]} : vector<8x256xf32> to vector<8x64xf32>
    %337 = math.tanh %336 : vector<8x64xf32>
    %338 = vector.extract_strided_slice %303 {offsets = [0, 192], sizes = [8, 64], strides = [1, 1]} : vector<8x256xf32> to vector<8x64xf32>
    %339 = arith.negf %338 : vector<8x64xf32>
    %340 = math.exp %339 : vector<8x64xf32>
    %cst_89 = arith.constant 1.000000e+00 : f32
    %341 = vector.broadcast %cst_89 : f32 to vector<8x64xf32>
    %342 = arith.addf %341, %340 : vector<8x64xf32>
    %343 = arith.divf %341, %342 : vector<8x64xf32>
    %344 = arith.mulf %315, %280 : vector<8x64xf32>
    %345 = arith.mulf %309, %317 : vector<8x64xf32>
    %346 = arith.addf %344, %345 : vector<8x64xf32>
    %347 = arith.mulf %335, %283 : vector<8x64xf32>
    %348 = arith.mulf %329, %337 : vector<8x64xf32>
    %349 = arith.addf %347, %348 : vector<8x64xf32>
    %350 = math.tanh %346 : vector<8x64xf32>
    %351 = arith.mulf %323, %350 : vector<8x64xf32>
    %352 = math.tanh %349 : vector<8x64xf32>
    %353 = arith.mulf %343, %352 : vector<8x64xf32>
    %c5_i32 = arith.constant 5 : i32
    %354 = tpu.concatenate %351, %353 in 1 : vector<8x64xf32>, vector<8x64xf32> -> vector<8x128xf32>
    %355 = arith.truncf %354 : vector<8x128xf32> to vector<8x128xbf16>
    %cst_90 = arith.constant dense<0.000000e+00> : vector<8x512xf32>
    %356 = tpu.matmul %355, %19, %cst_90 {dimension_numbers = #tpu.dot_dimension_numbers<[1], [0], [0], [1], [0, 0, 1, 1], [], []>} : vector<8x128xbf16>, vector<128x512xbf16>, vector<8x512xf32> -> vector<8x512xf32>
    %c8_i32_91 = arith.constant 8 : i32
    %357 = arith.muli %c5_i32, %c8_i32_91 : i32
    %358 = tpu.assume_multiple %357, 8 : i32
    %c7_i32_92 = arith.constant 7 : i32
    %359 = arith.subi %c7_i32_92, %c5_i32 : i32
    %c8_i32_93 = arith.constant 8 : i32
    %360 = arith.muli %359, %c8_i32_93 : i32
    %361 = tpu.assume_multiple %360, 8 : i32
    %362 = arith.index_cast %358 : i32 to index
    %c0_94 = arith.constant 0 : index
    %363 = vector.load %arg10[%362, %c0_94] : memref<64x256xf32, #tpu.memory_space<vmem>>, vector<8x256xf32>
    %364 = vector.extract_strided_slice %356 {offsets = [0, 0], sizes = [8, 256], strides = [1, 1]} : vector<8x512xf32> to vector<8x256xf32>
    %365 = arith.addf %363, %364 : vector<8x256xf32>
    %366 = arith.index_cast %361 : i32 to index
    %c0_95 = arith.constant 0 : index
    %367 = vector.load %arg11[%366, %c0_95] : memref<64x256xf32, #tpu.memory_space<vmem>>, vector<8x256xf32>
    %368 = vector.extract_strided_slice %356 {offsets = [0, 256], sizes = [8, 256], strides = [1, 1]} : vector<8x512xf32> to vector<8x256xf32>
    %369 = arith.addf %367, %368 : vector<8x256xf32>
    %370 = vector.extract_strided_slice %365 {offsets = [0, 0], sizes = [8, 64], strides = [1, 1]} : vector<8x256xf32> to vector<8x64xf32>
    %371 = arith.negf %370 : vector<8x64xf32>
    %372 = math.exp %371 : vector<8x64xf32>
    %cst_96 = arith.constant 1.000000e+00 : f32
    %373 = vector.broadcast %cst_96 : f32 to vector<8x64xf32>
    %374 = arith.addf %373, %372 : vector<8x64xf32>
    %375 = arith.divf %373, %374 : vector<8x64xf32>
    %376 = vector.extract_strided_slice %365 {offsets = [0, 64], sizes = [8, 64], strides = [1, 1]} : vector<8x256xf32> to vector<8x64xf32>
    %377 = arith.negf %376 : vector<8x64xf32>
    %378 = math.exp %377 : vector<8x64xf32>
    %cst_97 = arith.constant 1.000000e+00 : f32
    %379 = vector.broadcast %cst_97 : f32 to vector<8x64xf32>
    %380 = arith.addf %379, %378 : vector<8x64xf32>
    %381 = arith.divf %379, %380 : vector<8x64xf32>
    %382 = vector.extract_strided_slice %365 {offsets = [0, 128], sizes = [8, 64], strides = [1, 1]} : vector<8x256xf32> to vector<8x64xf32>
    %383 = math.tanh %382 : vector<8x64xf32>
    %384 = vector.extract_strided_slice %365 {offsets = [0, 192], sizes = [8, 64], strides = [1, 1]} : vector<8x256xf32> to vector<8x64xf32>
    %385 = arith.negf %384 : vector<8x64xf32>
    %386 = math.exp %385 : vector<8x64xf32>
    %cst_98 = arith.constant 1.000000e+00 : f32
    %387 = vector.broadcast %cst_98 : f32 to vector<8x64xf32>
    %388 = arith.addf %387, %386 : vector<8x64xf32>
    %389 = arith.divf %387, %388 : vector<8x64xf32>
    %390 = vector.extract_strided_slice %369 {offsets = [0, 0], sizes = [8, 64], strides = [1, 1]} : vector<8x256xf32> to vector<8x64xf32>
    %391 = arith.negf %390 : vector<8x64xf32>
    %392 = math.exp %391 : vector<8x64xf32>
    %cst_99 = arith.constant 1.000000e+00 : f32
    %393 = vector.broadcast %cst_99 : f32 to vector<8x64xf32>
    %394 = arith.addf %393, %392 : vector<8x64xf32>
    %395 = arith.divf %393, %394 : vector<8x64xf32>
    %396 = vector.extract_strided_slice %369 {offsets = [0, 64], sizes = [8, 64], strides = [1, 1]} : vector<8x256xf32> to vector<8x64xf32>
    %397 = arith.negf %396 : vector<8x64xf32>
    %398 = math.exp %397 : vector<8x64xf32>
    %cst_100 = arith.constant 1.000000e+00 : f32
    %399 = vector.broadcast %cst_100 : f32 to vector<8x64xf32>
    %400 = arith.addf %399, %398 : vector<8x64xf32>
    %401 = arith.divf %399, %400 : vector<8x64xf32>
    %402 = vector.extract_strided_slice %369 {offsets = [0, 128], sizes = [8, 64], strides = [1, 1]} : vector<8x256xf32> to vector<8x64xf32>
    %403 = math.tanh %402 : vector<8x64xf32>
    %404 = vector.extract_strided_slice %369 {offsets = [0, 192], sizes = [8, 64], strides = [1, 1]} : vector<8x256xf32> to vector<8x64xf32>
    %405 = arith.negf %404 : vector<8x64xf32>
    %406 = math.exp %405 : vector<8x64xf32>
    %cst_101 = arith.constant 1.000000e+00 : f32
    %407 = vector.broadcast %cst_101 : f32 to vector<8x64xf32>
    %408 = arith.addf %407, %406 : vector<8x64xf32>
    %409 = arith.divf %407, %408 : vector<8x64xf32>
    %410 = arith.mulf %381, %346 : vector<8x64xf32>
    %411 = arith.mulf %375, %383 : vector<8x64xf32>
    %412 = arith.addf %410, %411 : vector<8x64xf32>
    %413 = arith.mulf %401, %349 : vector<8x64xf32>
    %414 = arith.mulf %395, %403 : vector<8x64xf32>
    %415 = arith.addf %413, %414 : vector<8x64xf32>
    %416 = math.tanh %412 : vector<8x64xf32>
    %417 = arith.mulf %389, %416 : vector<8x64xf32>
    %418 = math.tanh %415 : vector<8x64xf32>
    %419 = arith.mulf %409, %418 : vector<8x64xf32>
    %c6_i32 = arith.constant 6 : i32
    %420 = tpu.concatenate %417, %419 in 1 : vector<8x64xf32>, vector<8x64xf32> -> vector<8x128xf32>
    %421 = arith.truncf %420 : vector<8x128xf32> to vector<8x128xbf16>
    %cst_102 = arith.constant dense<0.000000e+00> : vector<8x512xf32>
    %422 = tpu.matmul %421, %19, %cst_102 {dimension_numbers = #tpu.dot_dimension_numbers<[1], [0], [0], [1], [0, 0, 1, 1], [], []>} : vector<8x128xbf16>, vector<128x512xbf16>, vector<8x512xf32> -> vector<8x512xf32>
    %c8_i32_103 = arith.constant 8 : i32
    %423 = arith.muli %c6_i32, %c8_i32_103 : i32
    %424 = tpu.assume_multiple %423, 8 : i32
    %c7_i32_104 = arith.constant 7 : i32
    %425 = arith.subi %c7_i32_104, %c6_i32 : i32
    %c8_i32_105 = arith.constant 8 : i32
    %426 = arith.muli %425, %c8_i32_105 : i32
    %427 = tpu.assume_multiple %426, 8 : i32
    %428 = arith.index_cast %424 : i32 to index
    %c0_106 = arith.constant 0 : index
    %429 = vector.load %arg10[%428, %c0_106] : memref<64x256xf32, #tpu.memory_space<vmem>>, vector<8x256xf32>
    %430 = vector.extract_strided_slice %422 {offsets = [0, 0], sizes = [8, 256], strides = [1, 1]} : vector<8x512xf32> to vector<8x256xf32>
    %431 = arith.addf %429, %430 : vector<8x256xf32>
    %432 = arith.index_cast %427 : i32 to index
    %c0_107 = arith.constant 0 : index
    %433 = vector.load %arg11[%432, %c0_107] : memref<64x256xf32, #tpu.memory_space<vmem>>, vector<8x256xf32>
    %434 = vector.extract_strided_slice %422 {offsets = [0, 256], sizes = [8, 256], strides = [1, 1]} : vector<8x512xf32> to vector<8x256xf32>
    %435 = arith.addf %433, %434 : vector<8x256xf32>
    %436 = vector.extract_strided_slice %431 {offsets = [0, 0], sizes = [8, 64], strides = [1, 1]} : vector<8x256xf32> to vector<8x64xf32>
    %437 = arith.negf %436 : vector<8x64xf32>
    %438 = math.exp %437 : vector<8x64xf32>
    %cst_108 = arith.constant 1.000000e+00 : f32
    %439 = vector.broadcast %cst_108 : f32 to vector<8x64xf32>
    %440 = arith.addf %439, %438 : vector<8x64xf32>
    %441 = arith.divf %439, %440 : vector<8x64xf32>
    %442 = vector.extract_strided_slice %431 {offsets = [0, 64], sizes = [8, 64], strides = [1, 1]} : vector<8x256xf32> to vector<8x64xf32>
    %443 = arith.negf %442 : vector<8x64xf32>
    %444 = math.exp %443 : vector<8x64xf32>
    %cst_109 = arith.constant 1.000000e+00 : f32
    %445 = vector.broadcast %cst_109 : f32 to vector<8x64xf32>
    %446 = arith.addf %445, %444 : vector<8x64xf32>
    %447 = arith.divf %445, %446 : vector<8x64xf32>
    %448 = vector.extract_strided_slice %431 {offsets = [0, 128], sizes = [8, 64], strides = [1, 1]} : vector<8x256xf32> to vector<8x64xf32>
    %449 = math.tanh %448 : vector<8x64xf32>
    %450 = vector.extract_strided_slice %431 {offsets = [0, 192], sizes = [8, 64], strides = [1, 1]} : vector<8x256xf32> to vector<8x64xf32>
    %451 = arith.negf %450 : vector<8x64xf32>
    %452 = math.exp %451 : vector<8x64xf32>
    %cst_110 = arith.constant 1.000000e+00 : f32
    %453 = vector.broadcast %cst_110 : f32 to vector<8x64xf32>
    %454 = arith.addf %453, %452 : vector<8x64xf32>
    %455 = arith.divf %453, %454 : vector<8x64xf32>
    %456 = vector.extract_strided_slice %435 {offsets = [0, 0], sizes = [8, 64], strides = [1, 1]} : vector<8x256xf32> to vector<8x64xf32>
    %457 = arith.negf %456 : vector<8x64xf32>
    %458 = math.exp %457 : vector<8x64xf32>
    %cst_111 = arith.constant 1.000000e+00 : f32
    %459 = vector.broadcast %cst_111 : f32 to vector<8x64xf32>
    %460 = arith.addf %459, %458 : vector<8x64xf32>
    %461 = arith.divf %459, %460 : vector<8x64xf32>
    %462 = vector.extract_strided_slice %435 {offsets = [0, 64], sizes = [8, 64], strides = [1, 1]} : vector<8x256xf32> to vector<8x64xf32>
    %463 = arith.negf %462 : vector<8x64xf32>
    %464 = math.exp %463 : vector<8x64xf32>
    %cst_112 = arith.constant 1.000000e+00 : f32
    %465 = vector.broadcast %cst_112 : f32 to vector<8x64xf32>
    %466 = arith.addf %465, %464 : vector<8x64xf32>
    %467 = arith.divf %465, %466 : vector<8x64xf32>
    %468 = vector.extract_strided_slice %435 {offsets = [0, 128], sizes = [8, 64], strides = [1, 1]} : vector<8x256xf32> to vector<8x64xf32>
    %469 = math.tanh %468 : vector<8x64xf32>
    %470 = vector.extract_strided_slice %435 {offsets = [0, 192], sizes = [8, 64], strides = [1, 1]} : vector<8x256xf32> to vector<8x64xf32>
    %471 = arith.negf %470 : vector<8x64xf32>
    %472 = math.exp %471 : vector<8x64xf32>
    %cst_113 = arith.constant 1.000000e+00 : f32
    %473 = vector.broadcast %cst_113 : f32 to vector<8x64xf32>
    %474 = arith.addf %473, %472 : vector<8x64xf32>
    %475 = arith.divf %473, %474 : vector<8x64xf32>
    %476 = arith.mulf %447, %412 : vector<8x64xf32>
    %477 = arith.mulf %441, %449 : vector<8x64xf32>
    %478 = arith.addf %476, %477 : vector<8x64xf32>
    %479 = arith.mulf %467, %415 : vector<8x64xf32>
    %480 = arith.mulf %461, %469 : vector<8x64xf32>
    %481 = arith.addf %479, %480 : vector<8x64xf32>
    %482 = math.tanh %478 : vector<8x64xf32>
    %483 = arith.mulf %455, %482 : vector<8x64xf32>
    %484 = math.tanh %481 : vector<8x64xf32>
    %485 = arith.mulf %475, %484 : vector<8x64xf32>
    %c7_i32_114 = arith.constant 7 : i32
    %486 = tpu.concatenate %483, %485 in 1 : vector<8x64xf32>, vector<8x64xf32> -> vector<8x128xf32>
    %487 = arith.truncf %486 : vector<8x128xf32> to vector<8x128xbf16>
    %cst_115 = arith.constant dense<0.000000e+00> : vector<8x512xf32>
    %488 = tpu.matmul %487, %19, %cst_115 {dimension_numbers = #tpu.dot_dimension_numbers<[1], [0], [0], [1], [0, 0, 1, 1], [], []>} : vector<8x128xbf16>, vector<128x512xbf16>, vector<8x512xf32> -> vector<8x512xf32>
    %c8_i32_116 = arith.constant 8 : i32
    %489 = arith.muli %c7_i32_114, %c8_i32_116 : i32
    %490 = tpu.assume_multiple %489, 8 : i32
    %c7_i32_117 = arith.constant 7 : i32
    %491 = arith.subi %c7_i32_117, %c7_i32_114 : i32
    %c8_i32_118 = arith.constant 8 : i32
    %492 = arith.muli %491, %c8_i32_118 : i32
    %493 = tpu.assume_multiple %492, 8 : i32
    %494 = arith.index_cast %490 : i32 to index
    %c0_119 = arith.constant 0 : index
    %495 = vector.load %arg10[%494, %c0_119] : memref<64x256xf32, #tpu.memory_space<vmem>>, vector<8x256xf32>
    %496 = vector.extract_strided_slice %488 {offsets = [0, 0], sizes = [8, 256], strides = [1, 1]} : vector<8x512xf32> to vector<8x256xf32>
    %497 = arith.addf %495, %496 : vector<8x256xf32>
    %498 = arith.index_cast %493 : i32 to index
    %c0_120 = arith.constant 0 : index
    %499 = vector.load %arg11[%498, %c0_120] : memref<64x256xf32, #tpu.memory_space<vmem>>, vector<8x256xf32>
    %500 = vector.extract_strided_slice %488 {offsets = [0, 256], sizes = [8, 256], strides = [1, 1]} : vector<8x512xf32> to vector<8x256xf32>
    %501 = arith.addf %499, %500 : vector<8x256xf32>
    %502 = vector.extract_strided_slice %497 {offsets = [0, 0], sizes = [8, 64], strides = [1, 1]} : vector<8x256xf32> to vector<8x64xf32>
    %503 = arith.negf %502 : vector<8x64xf32>
    %504 = math.exp %503 : vector<8x64xf32>
    %cst_121 = arith.constant 1.000000e+00 : f32
    %505 = vector.broadcast %cst_121 : f32 to vector<8x64xf32>
    %506 = arith.addf %505, %504 : vector<8x64xf32>
    %507 = arith.divf %505, %506 : vector<8x64xf32>
    %508 = vector.extract_strided_slice %497 {offsets = [0, 64], sizes = [8, 64], strides = [1, 1]} : vector<8x256xf32> to vector<8x64xf32>
    %509 = arith.negf %508 : vector<8x64xf32>
    %510 = math.exp %509 : vector<8x64xf32>
    %cst_122 = arith.constant 1.000000e+00 : f32
    %511 = vector.broadcast %cst_122 : f32 to vector<8x64xf32>
    %512 = arith.addf %511, %510 : vector<8x64xf32>
    %513 = arith.divf %511, %512 : vector<8x64xf32>
    %514 = vector.extract_strided_slice %497 {offsets = [0, 128], sizes = [8, 64], strides = [1, 1]} : vector<8x256xf32> to vector<8x64xf32>
    %515 = math.tanh %514 : vector<8x64xf32>
    %516 = vector.extract_strided_slice %497 {offsets = [0, 192], sizes = [8, 64], strides = [1, 1]} : vector<8x256xf32> to vector<8x64xf32>
    %517 = arith.negf %516 : vector<8x64xf32>
    %518 = math.exp %517 : vector<8x64xf32>
    %cst_123 = arith.constant 1.000000e+00 : f32
    %519 = vector.broadcast %cst_123 : f32 to vector<8x64xf32>
    %520 = arith.addf %519, %518 : vector<8x64xf32>
    %521 = arith.divf %519, %520 : vector<8x64xf32>
    %522 = vector.extract_strided_slice %501 {offsets = [0, 0], sizes = [8, 64], strides = [1, 1]} : vector<8x256xf32> to vector<8x64xf32>
    %523 = arith.negf %522 : vector<8x64xf32>
    %524 = math.exp %523 : vector<8x64xf32>
    %cst_124 = arith.constant 1.000000e+00 : f32
    %525 = vector.broadcast %cst_124 : f32 to vector<8x64xf32>
    %526 = arith.addf %525, %524 : vector<8x64xf32>
    %527 = arith.divf %525, %526 : vector<8x64xf32>
    %528 = vector.extract_strided_slice %501 {offsets = [0, 64], sizes = [8, 64], strides = [1, 1]} : vector<8x256xf32> to vector<8x64xf32>
    %529 = arith.negf %528 : vector<8x64xf32>
    %530 = math.exp %529 : vector<8x64xf32>
    %cst_125 = arith.constant 1.000000e+00 : f32
    %531 = vector.broadcast %cst_125 : f32 to vector<8x64xf32>
    %532 = arith.addf %531, %530 : vector<8x64xf32>
    %533 = arith.divf %531, %532 : vector<8x64xf32>
    %534 = vector.extract_strided_slice %501 {offsets = [0, 128], sizes = [8, 64], strides = [1, 1]} : vector<8x256xf32> to vector<8x64xf32>
    %535 = math.tanh %534 : vector<8x64xf32>
    %536 = vector.extract_strided_slice %501 {offsets = [0, 192], sizes = [8, 64], strides = [1, 1]} : vector<8x256xf32> to vector<8x64xf32>
    %537 = arith.negf %536 : vector<8x64xf32>
    %538 = math.exp %537 : vector<8x64xf32>
    %cst_126 = arith.constant 1.000000e+00 : f32
    %539 = vector.broadcast %cst_126 : f32 to vector<8x64xf32>
    %540 = arith.addf %539, %538 : vector<8x64xf32>
    %541 = arith.divf %539, %540 : vector<8x64xf32>
    %542 = arith.mulf %513, %478 : vector<8x64xf32>
    %543 = arith.mulf %507, %515 : vector<8x64xf32>
    %544 = arith.addf %542, %543 : vector<8x64xf32>
    %545 = arith.mulf %533, %481 : vector<8x64xf32>
    %546 = arith.mulf %527, %535 : vector<8x64xf32>
    %547 = arith.addf %545, %546 : vector<8x64xf32>
    %548 = math.tanh %544 : vector<8x64xf32>
    %549 = arith.mulf %521, %548 : vector<8x64xf32>
    %550 = math.tanh %547 : vector<8x64xf32>
    %551 = arith.mulf %541, %550 : vector<8x64xf32>
    %c8_i32_127 = arith.constant 8 : i32
    %c0_128 = arith.constant 0 : index
    %c0_129 = arith.constant 0 : index
    %552 = vector.load %arg12[%c0_128, %c0_129] : memref<8x64xf32, #tpu.memory_space<vmem>>, vector<8x64xf32>
    tpu.vector_store %arg12[%c0_128, %c0_129], %549 {strides = array<i32>} : memref<8x64xf32, #tpu.memory_space<vmem>>, vector<8x64xf32>,
    %c0_130 = arith.constant 0 : index
    %c0_131 = arith.constant 0 : index
    %553 = vector.load %arg13[%c0_130, %c0_131] : memref<8x64xf32, #tpu.memory_space<vmem>>, vector<8x64xf32>
    tpu.vector_store %arg13[%c0_130, %c0_131], %551 {strides = array<i32>} : memref<8x64xf32, #tpu.memory_space<vmem>>, vector<8x64xf32>,
    %c0_132 = arith.constant 0 : index
    %c0_133 = arith.constant 0 : index
    %554 = vector.load %arg14[%c0_132, %c0_133] : memref<8x64xf32, #tpu.memory_space<vmem>>, vector<8x64xf32>
    tpu.vector_store %arg14[%c0_132, %c0_133], %544 {strides = array<i32>} : memref<8x64xf32, #tpu.memory_space<vmem>>, vector<8x64xf32>,
    %c0_134 = arith.constant 0 : index
    %c0_135 = arith.constant 0 : index
    %555 = vector.load %arg15[%c0_134, %c0_135] : memref<8x64xf32, #tpu.memory_space<vmem>>, vector<8x64xf32>
    tpu.vector_store %arg15[%c0_134, %c0_135], %547 {strides = array<i32>} : memref<8x64xf32, #tpu.memory_space<vmem>>, vector<8x64xf32>,
    %c0_i32_136 = arith.constant 0 : i32
    %556 = arith.cmpi eq, %arg1, %c0_i32_136 : i32
    %557 = arith.extui %556 : i1 to i32
    %c0_i32_137 = arith.constant 0 : i32
    %558 = arith.cmpi ne, %557, %c0_i32_137 : i32
    scf.if %558 {
      %559 = tpu.concatenate %549, %551 in 1 : vector<8x64xf32>, vector<8x64xf32> -> vector<8x128xf32>
      %c0_138 = arith.constant 0 : index
      %c0_139 = arith.constant 0 : index
      %560 = vector.load %arg9[%c0_138, %c0_139] : memref<8x128xf32, #tpu.memory_space<vmem>>, vector<8x128xf32>
      tpu.vector_store %arg9[%c0_138, %c0_139], %559 {strides = array<i32>} : memref<8x128xf32, #tpu.memory_space<vmem>>, vector<8x128xf32>,
    } else {
    }
    return
  }
  func.func @transform_0(%arg0: i32, %arg1: i32) -> (i32, i32, i32, i32) {
    %c0_i32 = arith.constant 0 : i32
    %c0_i32_0 = arith.constant 0 : i32
    %c0_i32_1 = arith.constant 0 : i32
    return %arg0, %arg1, %c0_i32, %c0_i32_0 : i32, i32, i32, i32
  }
  func.func @transform_1(%arg0: i32, %arg1: i32) -> (i32, i32, i32, i32) {
    %c0_i32 = arith.constant 0 : i32
    %0 = arith.subi %c0_i32, %arg1 : i32
    %c0_i32_0 = arith.constant 0 : i32
    %c0_i32_1 = arith.constant 0 : i32
    %c0_i32_2 = arith.constant 0 : i32
    return %arg0, %0, %c0_i32_0, %c0_i32_1 : i32, i32, i32, i32
  }
  func.func @transform_2(%arg0: i32, %arg1: i32) -> (i32, i32) {
    %c0_i32 = arith.constant 0 : i32
    %c0_i32_0 = arith.constant 0 : i32
    %c0_i32_1 = arith.constant 0 : i32
    return %c0_i32, %c0_i32_0 : i32, i32
  }
  func.func @transform_3(%arg0: i32, %arg1: i32) -> (i32, i32) {
    %c0_i32 = arith.constant 0 : i32
    %c0_i32_0 = arith.constant 0 : i32
    %c0_i32_1 = arith.constant 0 : i32
    return %c0_i32, %c0_i32_0 : i32, i32
  }
  func.func @transform_4(%arg0: i32, %arg1: i32) -> (i32, i32) {
    %c0_i32 = arith.constant 0 : i32
    %c0_i32_0 = arith.constant 0 : i32
    %c0_i32_1 = arith.constant 0 : i32
    return %c0_i32, %c0_i32_0 : i32, i32
  }
  func.func @transform_5(%arg0: i32, %arg1: i32) -> (i32, i32) {
    %c0_i32 = arith.constant 0 : i32
    %c0_i32_0 = arith.constant 0 : i32
    %c0_i32_1 = arith.constant 0 : i32
    return %c0_i32, %c0_i32_0 : i32, i32
  }
  func.func @transform_6(%arg0: i32, %arg1: i32) -> (i32, i32) {
    %c0_i32 = arith.constant 0 : i32
    %c0_i32_0 = arith.constant 0 : i32
    %c0_i32_1 = arith.constant 0 : i32
    return %c0_i32, %c0_i32_0 : i32, i32
  }
  func.func @transform_7(%arg0: i32, %arg1: i32) -> (i32, i32) {
    %c0_i32 = arith.constant 0 : i32
    %c0_i32_0 = arith.constant 0 : i32
    return %arg0, %c0_i32 : i32, i32
  }
}

</mosaic_0001>

<llo_original>
// kernel: tpu_custom_call.1
$region0: #{tpu_custom_call.1}
  #allocation0 [shape = 'u32[]', space=smem, size = 0x4, offset = 0x4, fixed_abs, tag = 'smem constant byte address 0x4 - core index']
  #allocation1 [shape = 'u32[144,128]{1,0:T(1,128)}', space=vmem, size = 0x12000, scoped, tag = 'internal scratch']
  #allocation2 [shape = 'f32[64,256]{1,0:T(8,128)}', space=vmem, size = 0x10000, scoped, tag = 'scratch operand']
  #allocation3 [shape = 'f32[64,256]{1,0:T(8,128)}', space=vmem, size = 0x10000, scoped, tag = 'scratch operand']
  #allocation4 [shape = 'f32[8,64]{1,0:T(8,128)}', space=vmem, size = 0x1000, scoped, tag = 'scratch operand']
  #allocation5 [shape = 'f32[8,64]{1,0:T(8,128)}', space=vmem, size = 0x1000, scoped, tag = 'scratch operand']
  #allocation6 [shape = 'f32[8,64]{1,0:T(8,128)}', space=vmem, size = 0x1000, scoped, tag = 'scratch operand']
  #allocation7 [shape = 'f32[8,64]{1,0:T(8,128)}', space=vmem, size = 0x1000, scoped, tag = 'scratch operand']
  %s0 = inlined_call_operand.vmem [shape: bf16[1,1,64,32], index: 0, kind: input, shape index: {}]
  %s1 = inlined_call_operand.vmem [shape: bf16[1,1,64,32], index: 1, kind: input, shape index: {}]
  %s2 = inlined_call_operand.vmem [shape: bf16[32,256], index: 2, kind: input, shape index: {}]
  %s3 = inlined_call_operand.vmem [shape: bf16[32,256], index: 3, kind: input, shape index: {}]
  %s4 = inlined_call_operand.vmem [shape: f32[1,256], index: 4, kind: input, shape index: {}]
  %s5 = inlined_call_operand.vmem [shape: f32[1,256], index: 5, kind: input, shape index: {}]
  %s6 = inlined_call_operand.hbm [shape: bf16[128,512], index: 6, kind: input, shape index: {}]
  %s7 = inlined_call_operand.hbm [shape: f32[8,128], index: 7, kind: output, shape index: {}]
  %s8 = sld [smem:[#allocation0]]
  $region50: #{tpu_custom_call.1} parent=0
    _
  %s10 = ssub.s32 1, %s8
  %s11 = scalar_select 0, %s10, %s8
  $region1: #{tpu_custom_call.1} parent=0
    #allocation8 [shape = 'u8[131072]{0}', space=vmem, size = 0x20000, scoped, tag = 'input window, operand 6, single buffered']
    #allocation9 [shape = 's32[1]{0}', space=sflag, size = 0x4, scoped, tag = 'scoped memory for tpu_custom_call.1']
    #allocation10 [shape = 's32[1]{0}', space=sflag, size = 0x4, scoped, tag = 'scoped memory for tpu_custom_call.1']
    #allocation11 [shape = 'u8[4096]{0}', space=vmem, size = 0x1000, scoped, tag = 'output window, operand 0, single buffered']
    %12 = vsyncpa [#allocation9], 0
    %13 = vsyncpa [#allocation10], 0
    // Predicated region
    $region2: #{tpu_custom_call.1} parent=1 // pred_check
      _
    $region3: #{tpu_custom_call.1} parent=1 // pred_check_branch
      %15 = sbr.rel (0) target = $region5
    $region4: #{tpu_custom_call.1} parent=1 // pred_region
      _
    $region5: #{tpu_custom_call.1} parent=1 // pred_fallthru
      _
    // Predicated region
    $region6: #{tpu_custom_call.1} parent=1 // pred_check
      _
    $region7: #{tpu_custom_call.1} parent=1 // pred_check_branch
      %17 = sbr.rel (0) target = $region9
    $region8: #{tpu_custom_call.1} parent=1 // pred_region
      %s18 = ssub.s32 0, 0
      %p19 = scmp.lt.s32.totalorder %s18, 0
      %s20 = scalar_select %p19, %s18, 0
      %s21 = smul.addr %s20, 8
      %s22 = smul.addr %s21, 4
      %s23 = scalar_lea.vmem %s1, %s22
      %s24 = ssub.s32 0, 0
    $region9: #{tpu_custom_call.1} parent=1 // pred_fallthru
      _
    // Predicated region
    $region10: #{tpu_custom_call.1} parent=1 // pred_check
      _
    $region11: #{tpu_custom_call.1} parent=1 // pred_check_branch
      %26 = sbr.rel (0) target = $region13
    $region12: #{tpu_custom_call.1} parent=1 // pred_region
      _
    $region13: #{tpu_custom_call.1} parent=1 // pred_fallthru
      _
    // Predicated region
    $region14: #{tpu_custom_call.1} parent=1 // pred_check
      _
    $region15: #{tpu_custom_call.1} parent=1 // pred_check_branch
      %28 = sbr.rel (0) target = $region17
    $region16: #{tpu_custom_call.1} parent=1 // pred_region
      _
    $region17: #{tpu_custom_call.1} parent=1 // pred_fallthru
      _
    // Predicated region
    $region18: #{tpu_custom_call.1} parent=1 // pred_check
      _
    $region19: #{tpu_custom_call.1} parent=1 // pred_check_branch
      %30 = sbr.rel (0) target = $region21
    $region20: #{tpu_custom_call.1} parent=1 // pred_region
      _
    $region21: #{tpu_custom_call.1} parent=1 // pred_fallthru
      _
    // Predicated region
    $region22: #{tpu_custom_call.1} parent=1 // pred_check
      _
    $region23: #{tpu_custom_call.1} parent=1 // pred_check_branch
      %32 = sbr.rel (0) target = $region25
    $region24: #{tpu_custom_call.1} parent=1 // pred_region
      _
    $region25: #{tpu_custom_call.1} parent=1 // pred_fallthru
      _
    // Predicated region
    $region26: #{tpu_custom_call.1} parent=1 // pred_check
      _
    $region27: #{tpu_custom_call.1} parent=1 // pred_check_branch
      %34 = sbr.rel (0) target = $region29
    $region28: #{tpu_custom_call.1} parent=1 // pred_region
      %s36 = ssub.s32 4096, 4096
      %37 = vsyncadd [#allocation9], %s36
      %s38 = sshll.u32 [#allocation8], 4
      %s39 = int_to_ptr.vmem [resolvable:$true] %s38
      %44 = dma.hbm_to_vmem [thread:$0]  %s6, 4096, %s39, [#allocation9], 256, 256, 16
    $region29: #{tpu_custom_call.1} parent=1 // pred_fallthru
      _
    // Predicated region
    $region30: #{tpu_custom_call.1} parent=1 // pred_check
      _
    $region31: #{tpu_custom_call.1} parent=1 // pred_check_branch
      %46 = sbr.rel (0) target = $region33
    $region32: #{tpu_custom_call.1} parent=1 // pred_region
      %47 = dma.done [#allocation9], 4096
    $region33: #{tpu_custom_call.1} parent=1 // pred_fallthru
      _
    %s48 = ssub.s32 0, 0
    %p49 = scmp.lt.s32.totalorder %s48, 0
    %s50 = scalar_select %p49, %s48, 0
    %s51 = smul.addr %s50, 8
    %s52 = smul.addr %s51, 4
    %s53 = scalar_lea.vmem %s1, %s52
    %s54 = ssub.s32 0, 0
    %p55 = scmp.lt.s32.totalorder %s54, 0
    %s56 = scalar_select %p55, %s54, 0
    %s57 = smul.addr %s56, 8
    %s58 = smul.addr %s57, 4
    %s59 = scalar_lea.vmem %s1, %s58
    %s60 = ssub.s32 0, 0
    %p62 = scmp.eq.s32.totalorder 0, 0
    // Predicated region
    $region34: #{tpu_custom_call.1} parent=1 // pred_check
      %p63 = pneg %p62
    $region35: #{tpu_custom_call.1} parent=1 // pred_check_branch
      %65 = sbr.rel (%p63) target = $region37
    $region36: #{tpu_custom_call.1} parent=1 // pred_region
      %vm66 = vcmask 523264
      %67 = vst.msk [vmem:[#allocation4] sm:$0xff] %vm66, 0.0
      %68 = vst.msk [vmem:[#allocation5] sm:$0xff] %vm66, 0.0
      %69 = vst.msk [vmem:[#allocation6] sm:$0xff] %vm66, 0.0
      %70 = vst.msk [vmem:[#allocation7] sm:$0xff] %vm66, 0.0
    $region37: #{tpu_custom_call.1} parent=1 // pred_fallthru
      _
    %v71 = vld [vmem:[%s0] sm:$0xf]
    %v72 = vld [vmem:[%s0 + $0x4] sm:$0xf]
    %v73 = vld [vmem:[%s0 + $0x8] sm:$0xf]
    %v74 = vld [vmem:[%s0 + $0xc] sm:$0xf]
    %v75 = vld [vmem:[%s0 + $0x10] sm:$0xf]
    %v76 = vld [vmem:[%s0 + $0x14] sm:$0xf]
    %v77 = vld [vmem:[%s0 + $0x18] sm:$0xf]
    %v78 = vld [vmem:[%s0 + $0x1c] sm:$0xf]
    %v79 = vld [vmem:[%s59] sm:$0xf]
    %v80 = vld [vmem:[%s59 + $0x4] sm:$0xf]
    %v81 = vld [vmem:[%s59 + $0x8] sm:$0xf]
    %v82 = vld [vmem:[%s59 + $0xc] sm:$0xf]
    %v83 = vld [vmem:[%s59 + $0x10] sm:$0xf]
    %v84 = vld [vmem:[%s59 + $0x14] sm:$0xf]
    %v85 = vld [vmem:[%s59 + $0x18] sm:$0xf]
    %v86 = vld [vmem:[%s59 + $0x1c] sm:$0xf]
    %v87 = vld [vmem:[%s2] sm:$0xff]
    %v88 = vld [vmem:[%s2 + $0x8] sm:$0xff]
    %v89 = vld [vmem:[%s2 + $0x10] sm:$0xff]
    %v90 = vld [vmem:[%s2 + $0x18] sm:$0xff]
    %v91 = vld [vmem:[%s4] sm:$0x3]
    %v93 = vlaneseq
    %v94 = vshrl.u32 %v93, 7
    %v95 = vsub.s32 0, %v94
    %v96 = vrot.slane %v91, %v95
    %v97 = vlaneseq
    %v98 = vshrl.u32 %v97, 7
    %v99 = vsub.s32 1, %v98
    %v100 = vrot.slane %v91, %v99
    %v111 = vunpack.c.l.b16 %v71
    %v112 = vunpack.c.l.b16 %v72
    %v113 = vunpack.c.l.b16 %v73
    %v114 = vunpack.c.l.b16 %v74
    %v115 = vunpack.c.l.b16 %v75
    %v116 = vunpack.c.l.b16 %v76
    %v117 = vunpack.c.l.b16 %v77
    %v118 = vunpack.c.l.b16 %v78
    %v119 = vpack.c.b16 %v112, %v111
    %v120 = vpack.c.b16 %v114, %v113
    %v121 = vpack.c.b16 %v116, %v115
    %v122 = vpack.c.b16 %v118, %v117
    %v127 = vunpack.c.l.b16 %v87
    %v128 = vunpack.c.h.b16 %v87
    %v129 = vunpack.c.l.b16 %v88
    %v130 = vunpack.c.h.b16 %v88
    %v131 = vunpack.c.l.b16 %v89
    %v132 = vunpack.c.h.b16 %v89
    %v133 = vunpack.c.l.b16 %v90
    %v134 = vunpack.c.h.b16 %v90
    %v135 = vpack.c.b16 %v129, %v127
    %v136 = vpack.c.b16 %v130, %v128
    %v137 = vpack.c.b16 %v133, %v131
    %v138 = vpack.c.b16 %v134, %v132
    %vm143 = vcmask 261120
    %v145 = vsel %vm143, %v119, 0
    %v148 = vsel %vm143, %v120, 0
    %v151 = vsel %vm143, %v121, 0
    %v154 = vsel %vm143, %v122, 0
    %156 = vmatprep.subr.bf16.mxu0 0
    %157 = vmatpush1.bf16.msra.mxu0 0
    %158 = vmatprep.subr.bf16.mxu0 0
    %159 = vmatpush1.bf16.msra.mxu0 0
    %160 = vmatprep.subr.bf16.mxu0 0
    %161 = vmatpush1.bf16.msra.mxu0 0
    %162 = vmatprep.subr.bf16.mxu0 0
    %163 = vmatpush1.bf16.msra.mxu0 0
    %164 = vmatprep.subr.bf16.mxu0 0
    %165 = vmatpush1.bf16.msra.mxu0 0
    %166 = vmatprep.subr.bf16.mxu0 0
    %167 = vmatpush1.bf16.msra.mxu0 0
    %168 = vmatprep.subr.bf16.mxu0 %v138
    %169 = vmatpush1.bf16.msra.mxu0 %v137
    %170 = vmatprep.subr.bf16.mxu0 %v136
    %171 = vmatpush1.bf16.msra.mxu0 %v135
    %172 = vmatprep.subr.bf16.mxu0 0
    %173 = vmatpush2.bf16.msra.mxu0 0
    %174 = vmatprep.subr.bf16.mxu0 0
    %175 = vmatpush2.bf16.msra.mxu0 0
    %176 = vmatprep.subr.bf16.mxu0 0
    %177 = vmatpush2.bf16.msra.mxu0 0
    %178 = vmatprep.subr.bf16.mxu0 0
    %179 = vmatpush2.bf16.msra.mxu0 0
    %180 = vmatprep.subr.bf16.mxu0 0
    %181 = vmatpush2.bf16.msra.mxu0 0
    %182 = vmatprep.subr.bf16.mxu0 0
    %183 = vmatpush2.bf16.msra.mxu0 0
    %184 = vmatprep.subr.bf16.mxu0 0
    %185 = vmatpush2.bf16.msra.mxu0 0
    %186 = vmatprep.subr.bf16.mxu0 0
    %187 = vmatpush2.bf16.msra.mxu0 0
    %188 = vmatprep.mubr.bf16.mxu0 0
    %189 = vmatmul.mubr.bf16.gmra.mxu0 %v145
    %v190 = vpop.f32.mrf.mxu0
    %v191 = vadd.f32 %v96, %v190
    %v192 = vpop.f32.mrf.mxu0
    %v193 = vadd.f32 %v100, %v192
    %v194 = vpop.f32.mrf.mxu0
    %v195 = vadd.f32 %v96, %v194
    %v196 = vpop.f32.mrf.mxu0
    %v197 = vadd.f32 %v100, %v196
    %198 = vmatprep.mubr.bf16.mxu0 0
    %199 = vmatmul.mubr.bf16.gmra.mxu0 %v148
    %v200 = vpop.f32.mrf.mxu0
    %v201 = vadd.f32 %v96, %v200
    %v202 = vpop.f32.mrf.mxu0
    %v203 = vadd.f32 %v100, %v202
    %v204 = vpop.f32.mrf.mxu0
    %v205 = vadd.f32 %v96, %v204
    %v206 = vpop.f32.mrf.mxu0
    %v207 = vadd.f32 %v100, %v206
    %208 = vmatprep.mubr.bf16.mxu0 0
    %209 = vmatmul.mubr.bf16.gmra.mxu0 %v151
    %v210 = vpop.f32.mrf.mxu0
    %v211 = vadd.f32 %v96, %v210
    %v212 = vpop.f32.mrf.mxu0
    %v213 = vadd.f32 %v100, %v212
    %v214 = vpop.f32.mrf.mxu0
    %v215 = vadd.f32 %v96, %v214
    %v216 = vpop.f32.mrf.mxu0
    %v217 = vadd.f32 %v100, %v216
    %218 = vmatprep.mubr.bf16.mxu0 0
    %219 = vmatmul.mubr.bf16.gmra.mxu0 %v154
    %v220 = vpop.f32.mrf.mxu0
    %v221 = vadd.f32 %v96, %v220
    %v222 = vpop.f32.mrf.mxu0
    %v223 = vadd.f32 %v100, %v222
    %v224 = vpop.f32.mrf.mxu0
    %v225 = vadd.f32 %v96, %v224
    %v226 = vpop.f32.mrf.mxu0
    %v227 = vadd.f32 %v100, %v226
    %228 = vdwg.mxu0
    %229 = vst [vmem:[#allocation2] sm:$0xff] %v191
    %230 = vst [vmem:[#allocation2 + $0x8] sm:$0xff] %v193
    %231 = vst [vmem:[#allocation2 + $0x10] sm:$0xff] %v195
    %232 = vst [vmem:[#allocation2 + $0x18] sm:$0xff] %v197
    %233 = vst [vmem:[#allocation2 + $0x20] sm:$0xff] %v201
    %234 = vst [vmem:[#allocation2 + $0x28] sm:$0xff] %v203
    %235 = vst [vmem:[#allocation2 + $0x30] sm:$0xff] %v205
    %236 = vst [vmem:[#allocation2 + $0x38] sm:$0xff] %v207
    %237 = vst [vmem:[#allocation2 + $0x40] sm:$0xff] %v211
    %238 = vst [vmem:[#allocation2 + $0x48] sm:$0xff] %v213
    %239 = vst [vmem:[#allocation2 + $0x50] sm:$0xff] %v215
    %240 = vst [vmem:[#allocation2 + $0x58] sm:$0xff] %v217
    %241 = vst [vmem:[#allocation2 + $0x60] sm:$0xff] %v221
    %242 = vst [vmem:[#allocation2 + $0x68] sm:$0xff] %v223
    %243 = vst [vmem:[#allocation2 + $0x70] sm:$0xff] %v225
    %244 = vst [vmem:[#allocation2 + $0x78] sm:$0xff] %v227
    %v245 = vld [vmem:[%s3] sm:$0xff]
    %v246 = vld [vmem:[%s3 + $0x8] sm:$0xff]
    %v247 = vld [vmem:[%s3 + $0x10] sm:$0xff]
    %v248 = vld [vmem:[%s3 + $0x18] sm:$0xff]
    %v249 = vld [vmem:[%s5] sm:$0x3]
    %v251 = vlaneseq
    %v252 = vshrl.u32 %v251, 7
    %v253 = vsub.s32 0, %v252
    %v254 = vrot.slane %v249, %v253
    %v255 = vlaneseq
    %v256 = vshrl.u32 %v255, 7
    %v257 = vsub.s32 1, %v256
    %v258 = vrot.slane %v249, %v257
    %v269 = vunpack.c.l.b16 %v79
    %v270 = vunpack.c.l.b16 %v80
    %v271 = vunpack.c.l.b16 %v81
    %v272 = vunpack.c.l.b16 %v82
    %v273 = vunpack.c.l.b16 %v83
    %v274 = vunpack.c.l.b16 %v84
    %v275 = vunpack.c.l.b16 %v85
    %v276 = vunpack.c.l.b16 %v86
    %v277 = vpack.c.b16 %v270, %v269
    %v278 = vpack.c.b16 %v272, %v271
    %v279 = vpack.c.b16 %v274, %v273
    %v280 = vpack.c.b16 %v276, %v275
    %v285 = vunpack.c.l.b16 %v245
    %v286 = vunpack.c.h.b16 %v245
    %v287 = vunpack.c.l.b16 %v246
    %v288 = vunpack.c.h.b16 %v246
    %v289 = vunpack.c.l.b16 %v247
    %v290 = vunpack.c.h.b16 %v247
    %v291 = vunpack.c.l.b16 %v248
    %v292 = vunpack.c.h.b16 %v248
    %v293 = vpack.c.b16 %v287, %v285
    %v294 = vpack.c.b16 %v288, %v286
    %v295 = vpack.c.b16 %v291, %v289
    %v296 = vpack.c.b16 %v292, %v290
    %v302 = vsel %vm143, %v277, 0
    %v305 = vsel %vm143, %v278, 0
    %v308 = vsel %vm143, %v279, 0
    %v311 = vsel %vm143, %v280, 0
    %313 = vmatprep.subr.bf16.mxu0 0
    %314 = vmatpush1.bf16.msra.mxu0 0
    %315 = vmatprep.subr.bf16.mxu0 0
    %316 = vmatpush1.bf16.msra.mxu0 0
    %317 = vmatprep.subr.bf16.mxu0 0
    %318 = vmatpush1.bf16.msra.mxu0 0
    %319 = vmatprep.subr.bf16.mxu0 0
    %320 = vmatpush1.bf16.msra.mxu0 0
    %321 = vmatprep.subr.bf16.mxu0 0
    %322 = vmatpush1.bf16.msra.mxu0 0
    %323 = vmatprep.subr.bf16.mxu0 0
    %324 = vmatpush1.bf16.msra.mxu0 0
    %325 = vmatprep.subr.bf16.mxu0 %v296
    %326 = vmatpush1.bf16.msra.mxu0 %v295
    %327 = vmatprep.subr.bf16.mxu0 %v294
    %328 = vmatpush1.bf16.msra.mxu0 %v293
    %329 = vmatprep.subr.bf16.mxu0 0
    %330 = vmatpush2.bf16.msra.mxu0 0
    %331 = vmatprep.subr.bf16.mxu0 0
    %332 = vmatpush2.bf16.msra.mxu0 0
    %333 = vmatprep.subr.bf16.mxu0 0
    %334 = vmatpush2.bf16.msra.mxu0 0
    %335 = vmatprep.subr.bf16.mxu0 0
    %336 = vmatpush2.bf16.msra.mxu0 0
    %337 = vmatprep.subr.bf16.mxu0 0
    %338 = vmatpush2.bf16.msra.mxu0 0
    %339 = vmatprep.subr.bf16.mxu0 0
    %340 = vmatpush2.bf16.msra.mxu0 0
    %341 = vmatprep.subr.bf16.mxu0 0
    %342 = vmatpush2.bf16.msra.mxu0 0
    %343 = vmatprep.subr.bf16.mxu0 0
    %344 = vmatpush2.bf16.msra.mxu0 0
    %345 = vmatprep.mubr.bf16.mxu0 0
    %346 = vmatmul.mubr.bf16.gmra.mxu0 %v302
    %v347 = vpop.f32.mrf.mxu0
    %v348 = vadd.f32 %v254, %v347
    %v349 = vpop.f32.mrf.mxu0
    %v350 = vadd.f32 %v258, %v349
    %v351 = vpop.f32.mrf.mxu0
    %v352 = vadd.f32 %v254, %v351
    %v353 = vpop.f32.mrf.mxu0
    %v354 = vadd.f32 %v258, %v353
    %355 = vmatprep.mubr.bf16.mxu0 0
    %356 = vmatmul.mubr.bf16.gmra.mxu0 %v305
    %v357 = vpop.f32.mrf.mxu0
    %v358 = vadd.f32 %v254, %v357
    %v359 = vpop.f32.mrf.mxu0
    %v360 = vadd.f32 %v258, %v359
    %v361 = vpop.f32.mrf.mxu0
    %v362 = vadd.f32 %v254, %v361
    %v363 = vpop.f32.mrf.mxu0
    %v364 = vadd.f32 %v258, %v363
    %365 = vmatprep.mubr.bf16.mxu0 0
    %366 = vmatmul.mubr.bf16.gmra.mxu0 %v308
    %v367 = vpop.f32.mrf.mxu0
    %v368 = vadd.f32 %v254, %v367
    %v369 = vpop.f32.mrf.mxu0
    %v370 = vadd.f32 %v258, %v369
    %v371 = vpop.f32.mrf.mxu0
    %v372 = vadd.f32 %v254, %v371
    %v373 = vpop.f32.mrf.mxu0
    %v374 = vadd.f32 %v258, %v373
    %375 = vmatprep.mubr.bf16.mxu0 0
    %376 = vmatmul.mubr.bf16.gmra.mxu0 %v311
    %v377 = vpop.f32.mrf.mxu0
    %v378 = vadd.f32 %v254, %v377
    %v379 = vpop.f32.mrf.mxu0
    %v380 = vadd.f32 %v258, %v379
    %v381 = vpop.f32.mrf.mxu0
    %v382 = vadd.f32 %v254, %v381
    %v383 = vpop.f32.mrf.mxu0
    %v384 = vadd.f32 %v258, %v383
    %385 = vdwg.mxu0
    %386 = vst [vmem:[#allocation3] sm:$0xff] %v348
    %387 = vst [vmem:[#allocation3 + $0x8] sm:$0xff] %v350
    %388 = vst [vmem:[#allocation3 + $0x10] sm:$0xff] %v352
    %389 = vst [vmem:[#allocation3 + $0x18] sm:$0xff] %v354
    %390 = vst [vmem:[#allocation3 + $0x20] sm:$0xff] %v358
    %391 = vst [vmem:[#allocation3 + $0x28] sm:$0xff] %v360
    %392 = vst [vmem:[#allocation3 + $0x30] sm:$0xff] %v362
    %393 = vst [vmem:[#allocation3 + $0x38] sm:$0xff] %v364
    %394 = vst [vmem:[#allocation3 + $0x40] sm:$0xff] %v368
    %395 = vst [vmem:[#allocation3 + $0x48] sm:$0xff] %v370
    %396 = vst [vmem:[#allocation3 + $0x50] sm:$0xff] %v372
    %397 = vst [vmem:[#allocation3 + $0x58] sm:$0xff] %v374
    %398 = vst [vmem:[#allocation3 + $0x60] sm:$0xff] %v378
    %399 = vst [vmem:[#allocation3 + $0x68] sm:$0xff] %v380
    %400 = vst [vmem:[#allocation3 + $0x70] sm:$0xff] %v382
    %401 = vst [vmem:[#allocation3 + $0x78] sm:$0xff] %v384
    %v402 = vld [vmem:[#allocation8] sm:$0xff]
    %v403 = vld [vmem:[#allocation8 + $0x8] sm:$0xff]
    %v404 = vld [vmem:[#allocation8 + $0x10] sm:$0xff]
    %v405 = vld [vmem:[#allocation8 + $0x18] sm:$0xff]
    %v406 = vld [vmem:[#allocation8 + $0x20] sm:$0xff]
    %v407 = vld [vmem:[#allocation8 + $0x28] sm:$0xff]
    %v408 = vld [vmem:[#allocation8 + $0x30] sm:$0xff]
    %v409 = vld [vmem:[#allocation8 + $0x38] sm:$0xff]
    %v410 = vld [vmem:[#allocation8 + $0x40] sm:$0xff]
    %v411 = vld [vmem:[#allocation8 + $0x48] sm:$0xff]
    %v412 = vld [vmem:[#allocation8 + $0x50] sm:$0xff]
    %v413 = vld [vmem:[#allocation8 + $0x58] sm:$0xff]
    %v414 = vld [vmem:[#allocation8 + $0x60] sm:$0xff]
    %v415 = vld [vmem:[#allocation8 + $0x68] sm:$0xff]
    %v416 = vld [vmem:[#allocation8 + $0x70] sm:$0xff]
    %v417 = vld [vmem:[#allocation8 + $0x78] sm:$0xff]
    %v418 = vld [vmem:[#allocation8 + $0x80] sm:$0xff]
    %v419 = vld [vmem:[#allocation8 + $0x88] sm:$0xff]
    %v420 = vld [vmem:[#allocation8 + $0x90] sm:$0xff]
    %v421 = vld [vmem:[#allocation8 + $0x98] sm:$0xff]
    %v422 = vld [vmem:[#allocation8 + $0xa0] sm:$0xff]
    %v423 = vld [vmem:[#allocation8 + $0xa8] sm:$0xff]
    %v424 = vld [vmem:[#allocation8 + $0xb0] sm:$0xff]
    %v425 = vld [vmem:[#allocation8 + $0xb8] sm:$0xff]
    %v426 = vld [vmem:[#allocation8 + $0xc0] sm:$0xff]
    %v427 = vld [vmem:[#allocation8 + $0xc8] sm:$0xff]
    %v428 = vld [vmem:[#allocation8 + $0xd0] sm:$0xff]
    %v429 = vld [vmem:[#allocation8 + $0xd8] sm:$0xff]
    %v430 = vld [vmem:[#allocation8 + $0xe0] sm:$0xff]
    %v431 = vld [vmem:[#allocation8 + $0xe8] sm:$0xff]
    %v432 = vld [vmem:[#allocation8 + $0xf0] sm:$0xff]
    %v433 = vld [vmem:[#allocation8 + $0xf8] sm:$0xff]
    %v434 = vld [vmem:[#allocation4] sm:$0xff]
    %v435 = vld [vmem:[#allocation5] sm:$0xff]
    %v436 = vld [vmem:[#allocation6] sm:$0xff]
    %v437 = vld [vmem:[#allocation7] sm:$0xff]
    %439 = vrot.lane.b32.xlu0 %v435, 64
    %v440 = vpop.permute.xlu0 %439
    %vm442 = vcmask 523264
    %v443 = vsel %vm442, %v434, %v440
    %v444 = vpack.c.bf16 %v443, %v443
    %v477 = vunpack.c.l.b16 %v402
    %v478 = vunpack.c.h.b16 %v402
    %v479 = vunpack.c.l.b16 %v403
    %v480 = vunpack.c.h.b16 %v403
    %v481 = vunpack.c.l.b16 %v404
    %v482 = vunpack.c.h.b16 %v404
    %v483 = vunpack.c.l.b16 %v405
    %v484 = vunpack.c.h.b16 %v405
    %v485 = vunpack.c.l.b16 %v406
    %v486 = vunpack.c.h.b16 %v406
    %v487 = vunpack.c.l.b16 %v407
    %v488 = vunpack.c.h.b16 %v407
    %v489 = vunpack.c.l.b16 %v408
    %v490 = vunpack.c.h.b16 %v408
    %v491 = vunpack.c.l.b16 %v409
    %v492 = vunpack.c.h.b16 %v409
    %v493 = vunpack.c.l.b16 %v410
    %v494 = vunpack.c.h.b16 %v410
    %v495 = vunpack.c.l.b16 %v411
    %v496 = vunpack.c.h.b16 %v411
    %v497 = vunpack.c.l.b16 %v412
    %v498 = vunpack.c.h.b16 %v412
    %v499 = vunpack.c.l.b16 %v413
    %v500 = vunpack.c.h.b16 %v413
    %v501 = vunpack.c.l.b16 %v414
    %v502 = vunpack.c.h.b16 %v414
    %v503 = vunpack.c.l.b16 %v415
    %v504 = vunpack.c.h.b16 %v415
    %v505 = vunpack.c.l.b16 %v416
    %v506 = vunpack.c.h.b16 %v416
    %v507 = vunpack.c.l.b16 %v417
    %v508 = vunpack.c.h.b16 %v417
    %v509 = vunpack.c.l.b16 %v418
    %v510 = vunpack.c.h.b16 %v418
    %v511 = vunpack.c.l.b16 %v419
    %v512 = vunpack.c.h.b16 %v419
    %v513 = vunpack.c.l.b16 %v420
    %v514 = vunpack.c.h.b16 %v420
    %v515 = vunpack.c.l.b16 %v421
    %v516 = vunpack.c.h.b16 %v421
    %v517 = vunpack.c.l.b16 %v422
    %v518 = vunpack.c.h.b16 %v422
    %v519 = vunpack.c.l.b16 %v423
    %v520 = vunpack.c.h.b16 %v423
    %v521 = vunpack.c.l.b16 %v424
    %v522 = vunpack.c.h.b16 %v424
    %v523 = vunpack.c.l.b16 %v425
    %v524 = vunpack.c.h.b16 %v425
    %v525 = vunpack.c.l.b16 %v426
    %v526 = vunpack.c.h.b16 %v426
    %v527 = vunpack.c.l.b16 %v427
    %v528 = vunpack.c.h.b16 %v427
    %v529 = vunpack.c.l.b16 %v428
    %v530 = vunpack.c.h.b16 %v428
    %v531 = vunpack.c.l.b16 %v429
    %v532 = vunpack.c.h.b16 %v429
    %v533 = vunpack.c.l.b16 %v430
    %v534 = vunpack.c.h.b16 %v430
    %v535 = vunpack.c.l.b16 %v431
    %v536 = vunpack.c.h.b16 %v431
    %v537 = vunpack.c.l.b16 %v432
    %v538 = vunpack.c.h.b16 %v432
    %v539 = vunpack.c.l.b16 %v433
    %v540 = vunpack.c.h.b16 %v433
    %v541 = vpack.c.b16 %v481, %v477
    %v542 = vpack.c.b16 %v482, %v478
    %v543 = vpack.c.b16 %v483, %v479
    %v544 = vpack.c.b16 %v484, %v480
    %v545 = vpack.c.b16 %v489, %v485
    %v546 = vpack.c.b16 %v490, %v486
    %v547 = vpack.c.b16 %v491, %v487
    %v548 = vpack.c.b16 %v492, %v488
    %v549 = vpack.c.b16 %v497, %v493
    %v550 = vpack.c.b16 %v498, %v494
    %v551 = vpack.c.b16 %v499, %v495
    %v552 = vpack.c.b16 %v500, %v496
    %v553 = vpack.c.b16 %v505, %v501
    %v554 = vpack.c.b16 %v506, %v502
    %v555 = vpack.c.b16 %v507, %v503
    %v556 = vpack.c.b16 %v508, %v504
    %v557 = vpack.c.b16 %v513, %v509
    %v558 = vpack.c.b16 %v514, %v510
    %v559 = vpack.c.b16 %v515, %v511
    %v560 = vpack.c.b16 %v516, %v512
    %v561 = vpack.c.b16 %v521, %v517
    %v562 = vpack.c.b16 %v522, %v518
    %v563 = vpack.c.b16 %v523, %v519
    %v564 = vpack.c.b16 %v524, %v520
    %v565 = vpack.c.b16 %v529, %v525
    %v566 = vpack.c.b16 %v530, %v526
    %v567 = vpack.c.b16 %v531, %v527
    %v568 = vpack.c.b16 %v532, %v528
    %v569 = vpack.c.b16 %v537, %v533
    %v570 = vpack.c.b16 %v538, %v534
    %v571 = vpack.c.b16 %v539, %v535
    %v572 = vpack.c.b16 %v540, %v536
    %605 = vmatprep.subr.bf16.mxu0 %v570
    %606 = vmatpush1.bf16.msra.mxu0 %v569
    %607 = vmatprep.subr.bf16.mxu0 %v566
    %608 = vmatpush1.bf16.msra.mxu0 %v565
    %609 = vmatprep.subr.bf16.mxu0 %v562
    %610 = vmatpush1.bf16.msra.mxu0 %v561
    %611 = vmatprep.subr.bf16.mxu0 %v558
    %612 = vmatpush1.bf16.msra.mxu0 %v557
    %613 = vmatprep.subr.bf16.mxu0 %v554
    %614 = vmatpush1.bf16.msra.mxu0 %v553
    %615 = vmatprep.subr.bf16.mxu0 %v550
    %616 = vmatpush1.bf16.msra.mxu0 %v549
    %617 = vmatprep.subr.bf16.mxu0 %v546
    %618 = vmatpush1.bf16.msra.mxu0 %v545
    %619 = vmatprep.subr.bf16.mxu0 %v542
    %620 = vmatpush1.bf16.msra.mxu0 %v541
    %621 = vmatprep.subr.bf16.mxu0 0
    %622 = vmatpush2.bf16.msra.mxu0 0
    %623 = vmatprep.subr.bf16.mxu0 0
    %624 = vmatpush2.bf16.msra.mxu0 0
    %625 = vmatprep.subr.bf16.mxu0 0
    %626 = vmatpush2.bf16.msra.mxu0 0
    %627 = vmatprep.subr.bf16.mxu0 0
    %628 = vmatpush2.bf16.msra.mxu0 0
    %629 = vmatprep.subr.bf16.mxu0 0
    %630 = vmatpush2.bf16.msra.mxu0 0
    %631 = vmatprep.subr.bf16.mxu0 0
    %632 = vmatpush2.bf16.msra.mxu0 0
    %633 = vmatprep.subr.bf16.mxu0 0
    %634 = vmatpush2.bf16.msra.mxu0 0
    %635 = vmatprep.subr.bf16.mxu0 0
    %636 = vmatpush2.bf16.msra.mxu0 0
    %637 = vmatprep.mubr.bf16.mxu0 0
    %638 = vmatmul.mubr.bf16.gmra.mxu0 %v444
    %v639 = vpop.f32.mrf.mxu0
    %v640 = vadd.f32 0.0, %v639
    %v641 = vpop.f32.mrf.mxu0
    %v642 = vadd.f32 0.0, %v641
    %v643 = vpop.f32.mrf.mxu0
    %v644 = vpop.f32.mrf.mxu0
    %645 = vdwg.mxu0
    %646 = vmatprep.subr.bf16.mxu0 %v572
    %647 = vmatpush1.bf16.msra.mxu0 %v571
    %648 = vmatprep.subr.bf16.mxu0 %v568
    %649 = vmatpush1.bf16.msra.mxu0 %v567
    %650 = vmatprep.subr.bf16.mxu0 %v564
    %651 = vmatpush1.bf16.msra.mxu0 %v563
    %652 = vmatprep.subr.bf16.mxu0 %v560
    %653 = vmatpush1.bf16.msra.mxu0 %v559
    %654 = vmatprep.subr.bf16.mxu0 %v556
    %655 = vmatpush1.bf16.msra.mxu0 %v555
    %656 = vmatprep.subr.bf16.mxu0 %v552
    %657 = vmatpush1.bf16.msra.mxu0 %v551
    %658 = vmatprep.subr.bf16.mxu0 %v548
    %659 = vmatpush1.bf16.msra.mxu0 %v547
    %660 = vmatprep.subr.bf16.mxu0 %v544
    %661 = vmatpush1.bf16.msra.mxu0 %v543
    %662 = vmatprep.subr.bf16.mxu0 0
    %663 = vmatpush2.bf16.msra.mxu0 0
    %664 = vmatprep.subr.bf16.mxu0 0
    %665 = vmatpush2.bf16.msra.mxu0 0
    %666 = vmatprep.subr.bf16.mxu0 0
    %667 = vmatpush2.bf16.msra.mxu0 0
    %668 = vmatprep.subr.bf16.mxu0 0
    %669 = vmatpush2.bf16.msra.mxu0 0
    %670 = vmatprep.subr.bf16.mxu0 0
    %671 = vmatpush2.bf16.msra.mxu0 0
    %672 = vmatprep.subr.bf16.mxu0 0
    %673 = vmatpush2.bf16.msra.mxu0 0
    %674 = vmatprep.subr.bf16.mxu0 0
    %675 = vmatpush2.bf16.msra.mxu0 0
    %676 = vmatprep.subr.bf16.mxu0 0
    %677 = vmatpush2.bf16.msra.mxu0 0
    %678 = vmatprep.mubr.bf16.mxu0 0
    %679 = vmatmul.mubr.bf16.gmra.mxu0 %v444
    %v680 = vpop.f32.mrf.mxu0
    %v681 = vadd.f32 0.0, %v680
    %v682 = vpop.f32.mrf.mxu0
    %v683 = vadd.f32 0.0, %v682
    %v684 = vpop.f32.mrf.mxu0
    %v685 = vpop.f32.mrf.mxu0
    %686 = vdwg.mxu0
    %s687 = smul.u32 0, 2
    %s688 = smul.addr %s687, 8
    %s689 = scalar_lea.vmem [#allocation2], %s688
    %v690 = vld [vmem:[%s689] sm:$0xff]
    %v691 = vld [vmem:[%s689 + $0x8] sm:$0xff]
    %v692 = vadd.f32 %v690, %v640
    %v693 = vadd.f32 %v691, %v642
    %s694 = smul.u32 7, 2
    %s695 = smul.addr %s694, 8
    %s696 = scalar_lea.vmem [#allocation3], %s695
    %v697 = vld [vmem:[%s696] sm:$0xff]
    %v698 = vld [vmem:[%s696 + $0x8] sm:$0xff]
    %v699 = vadd.f32 %v697, %v681
    %v700 = vadd.f32 %v698, %v683
    %v701 = vxor.u32 %v692, 2147483648
    %v702 = vmul.f32 %v701, 1.442695
    %v703 = vpow.pop %v702
    %v704 = vadd.f32 %v703, 1.0
    %v705 = vrcp.pop %v704
    %v706 = vmul.f32 1.0, %v705
    %v707 = vtanh.pop %v693
    %v708 = vxor.u32 %v693, 2147483648
    %v709 = vmul.f32 %v708, 1.442695
    %v710 = vpow.pop %v709
    %v711 = vadd.f32 %v710, 1.0
    %v712 = vrcp.pop %v711
    %v713 = vmul.f32 1.0, %v712
    %v714 = vxor.u32 %v699, 2147483648
    %v715 = vmul.f32 %v714, 1.442695
    %v716 = vpow.pop %v715
    %v717 = vadd.f32 %v716, 1.0
    %v718 = vrcp.pop %v717
    %v719 = vmul.f32 1.0, %v718
    %v720 = vtanh.pop %v700
    %v721 = vxor.u32 %v700, 2147483648
    %v722 = vmul.f32 %v721, 1.442695
    %v723 = vpow.pop %v722
    %v724 = vadd.f32 %v723, 1.0
    %v725 = vrcp.pop %v724
    %v726 = vmul.f32 1.0, %v725
    %728 = vrot.lane.b32.xlu0 %v436, 64
    %v729 = vpop.permute.xlu0 %728
    %v731 = vmul.f32 %v706, %v729
    %v732 = vmul.f32 %v706, %v707
    %734 = vrot.lane.b32.xlu0 %v732, 64
    %v735 = vpop.permute.xlu0 %734
    %v737 = vadd.f32 %v731, %v735
    %739 = vrot.lane.b32.xlu0 %v437, 64
    %v740 = vpop.permute.xlu0 %739
    %v742 = vmul.f32 %v719, %v740
    %v743 = vmul.f32 %v719, %v720
    %745 = vrot.lane.b32.xlu0 %v743, 64
    %v746 = vpop.permute.xlu0 %745
    %v748 = vadd.f32 %v742, %v746
    %v749 = vtanh.pop %v737
    %v750 = vmul.f32 %v713, %v749
    %v751 = vtanh.pop %v748
    %v752 = vmul.f32 %v726, %v751
    %754 = vrot.lane.b32.xlu0 %v750, 64
    %v755 = vpop.permute.xlu0 %754
    %v757 = vsel %vm442, %v755, %v752
    %v758 = vpack.c.bf16 %v757, %v757
    %759 = vmatprep.subr.bf16.mxu0 %v570
    %760 = vmatpush1.bf16.msra.mxu0 %v569
    %761 = vmatprep.subr.bf16.mxu0 %v566
    %762 = vmatpush1.bf16.msra.mxu0 %v565
    %763 = vmatprep.subr.bf16.mxu0 %v562
    %764 = vmatpush1.bf16.msra.mxu0 %v561
    %765 = vmatprep.subr.bf16.mxu0 %v558
    %766 = vmatpush1.bf16.msra.mxu0 %v557
    %767 = vmatprep.subr.bf16.mxu0 %v554
    %768 = vmatpush1.bf16.msra.mxu0 %v553
    %769 = vmatprep.subr.bf16.mxu0 %v550
    %770 = vmatpush1.bf16.msra.mxu0 %v549
    %771 = vmatprep.subr.bf16.mxu0 %v546
    %772 = vmatpush1.bf16.msra.mxu0 %v545
    %773 = vmatprep.subr.bf16.mxu0 %v542
    %774 = vmatpush1.bf16.msra.mxu0 %v541
    %775 = vmatprep.subr.bf16.mxu0 0
    %776 = vmatpush2.bf16.msra.mxu0 0
    %777 = vmatprep.subr.bf16.mxu0 0
    %778 = vmatpush2.bf16.msra.mxu0 0
    %779 = vmatprep.subr.bf16.mxu0 0
    %780 = vmatpush2.bf16.msra.mxu0 0
    %781 = vmatprep.subr.bf16.mxu0 0
    %782 = vmatpush2.bf16.msra.mxu0 0
    %783 = vmatprep.subr.bf16.mxu0 0
    %784 = vmatpush2.bf16.msra.mxu0 0
    %785 = vmatprep.subr.bf16.mxu0 0
    %786 = vmatpush2.bf16.msra.mxu0 0
    %787 = vmatprep.subr.bf16.mxu0 0
    %788 = vmatpush2.bf16.msra.mxu0 0
    %789 = vmatprep.subr.bf16.mxu0 0
    %790 = vmatpush2.bf16.msra.mxu0 0
    %791 = vmatprep.mubr.bf16.mxu0 0
    %792 = vmatmul.mubr.bf16.gmra.mxu0 %v758
    %v793 = vpop.f32.mrf.mxu0
    %v794 = vadd.f32 0.0, %v793
    %v795 = vpop.f32.mrf.mxu0
    %v796 = vadd.f32 0.0, %v795
    %v797 = vpop.f32.mrf.mxu0
    %v798 = vpop.f32.mrf.mxu0
    %799 = vdwg.mxu0
    %800 = vmatprep.subr.bf16.mxu0 %v572
    %801 = vmatpush1.bf16.msra.mxu0 %v571
    %802 = vmatprep.subr.bf16.mxu0 %v568
    %803 = vmatpush1.bf16.msra.mxu0 %v567
    %804 = vmatprep.subr.bf16.mxu0 %v564
    %805 = vmatpush1.bf16.msra.mxu0 %v563
    %806 = vmatprep.subr.bf16.mxu0 %v560
    %807 = vmatpush1.bf16.msra.mxu0 %v559
    %808 = vmatprep.subr.bf16.mxu0 %v556
    %809 = vmatpush1.bf16.msra.mxu0 %v555
    %810 = vmatprep.subr.bf16.mxu0 %v552
    %811 = vmatpush1.bf16.msra.mxu0 %v551
    %812 = vmatprep.subr.bf16.mxu0 %v548
    %813 = vmatpush1.bf16.msra.mxu0 %v547
    %814 = vmatprep.subr.bf16.mxu0 %v544
    %815 = vmatpush1.bf16.msra.mxu0 %v543
    %816 = vmatprep.subr.bf16.mxu0 0
    %817 = vmatpush2.bf16.msra.mxu0 0
    %818 = vmatprep.subr.bf16.mxu0 0
    %819 = vmatpush2.bf16.msra.mxu0 0
    %820 = vmatprep.subr.bf16.mxu0 0
    %821 = vmatpush2.bf16.msra.mxu0 0
    %822 = vmatprep.subr.bf16.mxu0 0
    %823 = vmatpush2.bf16.msra.mxu0 0
    %824 = vmatprep.subr.bf16.mxu0 0
    %825 = vmatpush2.bf16.msra.mxu0 0
    %826 = vmatprep.subr.bf16.mxu0 0
    %827 = vmatpush2.bf16.msra.mxu0 0
    %828 = vmatprep.subr.bf16.mxu0 0
    %829 = vmatpush2.bf16.msra.mxu0 0
    %830 = vmatprep.subr.bf16.mxu0 0
    %831 = vmatpush2.bf16.msra.mxu0 0
    %832 = vmatprep.mubr.bf16.mxu0 0
    %833 = vmatmul.mubr.bf16.gmra.mxu0 %v758
    %v834 = vpop.f32.mrf.mxu0
    %v835 = vadd.f32 0.0, %v834
    %v836 = vpop.f32.mrf.mxu0
    %v837 = vadd.f32 0.0, %v836
    %v838 = vpop.f32.mrf.mxu0
    %v839 = vpop.f32.mrf.mxu0
    %840 = vdwg.mxu0
    %s841 = smul.u32 1, 2
    %s842 = smul.addr %s841, 8
    %s843 = scalar_lea.vmem [#allocation2], %s842
    %v844 = vld [vmem:[%s843] sm:$0xff]
    %v845 = vld [vmem:[%s843 + $0x8] sm:$0xff]
    %v846 = vadd.f32 %v844, %v794
    %v847 = vadd.f32 %v845, %v796
    %s848 = smul.u32 6, 2
    %s849 = smul.addr %s848, 8
    %s850 = scalar_lea.vmem [#allocation3], %s849
    %v851 = vld [vmem:[%s850] sm:$0xff]
    %v852 = vld [vmem:[%s850 + $0x8] sm:$0xff]
    %v853 = vadd.f32 %v851, %v835
    %v854 = vadd.f32 %v852, %v837
    %v855 = vxor.u32 %v846, 2147483648
    %v856 = vmul.f32 %v855, 1.442695
    %v857 = vpow.pop %v856
    %v858 = vadd.f32 %v857, 1.0
    %v859 = vrcp.pop %v858
    %v860 = vmul.f32 1.0, %v859
    %v861 = vtanh.pop %v847
    %v862 = vxor.u32 %v847, 2147483648
    %v863 = vmul.f32 %v862, 1.442695
    %v864 = vpow.pop %v863
    %v865 = vadd.f32 %v864, 1.0
    %v866 = vrcp.pop %v865
    %v867 = vmul.f32 1.0, %v866
    %v868 = vxor.u32 %v853, 2147483648
    %v869 = vmul.f32 %v868, 1.442695
    %v870 = vpow.pop %v869
    %v871 = vadd.f32 %v870, 1.0
    %v872 = vrcp.pop %v871
    %v873 = vmul.f32 1.0, %v872
    %v874 = vtanh.pop %v854
    %v875 = vxor.u32 %v854, 2147483648
    %v876 = vmul.f32 %v875, 1.442695
    %v877 = vpow.pop %v876
    %v878 = vadd.f32 %v877, 1.0
    %v879 = vrcp.pop %v878
    %v880 = vmul.f32 1.0, %v879
    %v881 = vmul.f32 %v860, %v737
    %v882 = vmul.f32 %v860, %v861
    %884 = vrot.lane.b32.xlu0 %v882, 64
    %v885 = vpop.permute.xlu0 %884
    %v887 = vadd.f32 %v881, %v885
    %v888 = vmul.f32 %v873, %v748
    %v889 = vmul.f32 %v873, %v874
    %891 = vrot.lane.b32.xlu0 %v889, 64
    %v892 = vpop.permute.xlu0 %891
    %v894 = vadd.f32 %v888, %v892
    %v895 = vtanh.pop %v887
    %v896 = vmul.f32 %v867, %v895
    %v897 = vtanh.pop %v894
    %v898 = vmul.f32 %v880, %v897
    %900 = vrot.lane.b32.xlu0 %v896, 64
    %v901 = vpop.permute.xlu0 %900
    %v903 = vsel %vm442, %v901, %v898
    %v904 = vpack.c.bf16 %v903, %v903
    %905 = vmatprep.subr.bf16.mxu0 %v570
    %906 = vmatpush1.bf16.msra.mxu0 %v569
    %907 = vmatprep.subr.bf16.mxu0 %v566
    %908 = vmatpush1.bf16.msra.mxu0 %v565
    %909 = vmatprep.subr.bf16.mxu0 %v562
    %910 = vmatpush1.bf16.msra.mxu0 %v561
    %911 = vmatprep.subr.bf16.mxu0 %v558
    %912 = vmatpush1.bf16.msra.mxu0 %v557
    %913 = vmatprep.subr.bf16.mxu0 %v554
    %914 = vmatpush1.bf16.msra.mxu0 %v553
    %915 = vmatprep.subr.bf16.mxu0 %v550
    %916 = vmatpush1.bf16.msra.mxu0 %v549
    %917 = vmatprep.subr.bf16.mxu0 %v546
    %918 = vmatpush1.bf16.msra.mxu0 %v545
    %919 = vmatprep.subr.bf16.mxu0 %v542
    %920 = vmatpush1.bf16.msra.mxu0 %v541
    %921 = vmatprep.subr.bf16.mxu0 0
    %922 = vmatpush2.bf16.msra.mxu0 0
    %923 = vmatprep.subr.bf16.mxu0 0
    %924 = vmatpush2.bf16.msra.mxu0 0
    %925 = vmatprep.subr.bf16.mxu0 0
    %926 = vmatpush2.bf16.msra.mxu0 0
    %927 = vmatprep.subr.bf16.mxu0 0
    %928 = vmatpush2.bf16.msra.mxu0 0
    %929 = vmatprep.subr.bf16.mxu0 0
    %930 = vmatpush2.bf16.msra.mxu0 0
    %931 = vmatprep.subr.bf16.mxu0 0
    %932 = vmatpush2.bf16.msra.mxu0 0
    %933 = vmatprep.subr.bf16.mxu0 0
    %934 = vmatpush2.bf16.msra.mxu0 0
    %935 = vmatprep.subr.bf16.mxu0 0
    %936 = vmatpush2.bf16.msra.mxu0 0
    %937 = vmatprep.mubr.bf16.mxu0 0
    %938 = vmatmul.mubr.bf16.gmra.mxu0 %v904
    %v939 = vpop.f32.mrf.mxu0
    %v940 = vadd.f32 0.0, %v939
    %v941 = vpop.f32.mrf.mxu0
    %v942 = vadd.f32 0.0, %v941
    %v943 = vpop.f32.mrf.mxu0
    %v944 = vpop.f32.mrf.mxu0
    %945 = vdwg.mxu0
    %946 = vmatprep.subr.bf16.mxu0 %v572
    %947 = vmatpush1.bf16.msra.mxu0 %v571
    %948 = vmatprep.subr.bf16.mxu0 %v568
    %949 = vmatpush1.bf16.msra.mxu0 %v567
    %950 = vmatprep.subr.bf16.mxu0 %v564
    %951 = vmatpush1.bf16.msra.mxu0 %v563
    %952 = vmatprep.subr.bf16.mxu0 %v560
    %953 = vmatpush1.bf16.msra.mxu0 %v559
    %954 = vmatprep.subr.bf16.mxu0 %v556
    %955 = vmatpush1.bf16.msra.mxu0 %v555
    %956 = vmatprep.subr.bf16.mxu0 %v552
    %957 = vmatpush1.bf16.msra.mxu0 %v551
    %958 = vmatprep.subr.bf16.mxu0 %v548
    %959 = vmatpush1.bf16.msra.mxu0 %v547
    %960 = vmatprep.subr.bf16.mxu0 %v544
    %961 = vmatpush1.bf16.msra.mxu0 %v543
    %962 = vmatprep.subr.bf16.mxu0 0
    %963 = vmatpush2.bf16.msra.mxu0 0
    %964 = vmatprep.subr.bf16.mxu0 0
    %965 = vmatpush2.bf16.msra.mxu0 0
    %966 = vmatprep.subr.bf16.mxu0 0
    %967 = vmatpush2.bf16.msra.mxu0 0
    %968 = vmatprep.subr.bf16.mxu0 0
    %969 = vmatpush2.bf16.msra.mxu0 0
    %970 = vmatprep.subr.bf16.mxu0 0
    %971 = vmatpush2.bf16.msra.mxu0 0
    %972 = vmatprep.subr.bf16.mxu0 0
    %973 = vmatpush2.bf16.msra.mxu0 0
    %974 = vmatprep.subr.bf16.mxu0 0
    %975 = vmatpush2.bf16.msra.mxu0 0
    %976 = vmatprep.subr.bf16.mxu0 0
    %977 = vmatpush2.bf16.msra.mxu0 0
    %978 = vmatprep.mubr.bf16.mxu0 0
    %979 = vmatmul.mubr.bf16.gmra.mxu0 %v904
    %v980 = vpop.f32.mrf.mxu0
    %v981 = vadd.f32 0.0, %v980
    %v982 = vpop.f32.mrf.mxu0
    %v983 = vadd.f32 0.0, %v982
    %v984 = vpop.f32.mrf.mxu0
    %v985 = vpop.f32.mrf.mxu0
    %986 = vdwg.mxu0
    %s987 = smul.u32 2, 2
    %s988 = smul.addr %s987, 8
    %s989 = scalar_lea.vmem [#allocation2], %s988
    %v990 = vld [vmem:[%s989] sm:$0xff]
    %v991 = vld [vmem:[%s989 + $0x8] sm:$0xff]
    %v992 = vadd.f32 %v990, %v940
    %v993 = vadd.f32 %v991, %v942
    %s994 = smul.u32 5, 2
    %s995 = smul.addr %s994, 8
    %s996 = scalar_lea.vmem [#allocation3], %s995
    %v997 = vld [vmem:[%s996] sm:$0xff]
    %v998 = vld [vmem:[%s996 + $0x8] sm:$0xff]
    %v999 = vadd.f32 %v997, %v981
    %v1000 = vadd.f32 %v998, %v983
    %v1001 = vxor.u32 %v992, 2147483648
    %v1002 = vmul.f32 %v1001, 1.442695
    %v1003 = vpow.pop %v1002
    %v1004 = vadd.f32 %v1003, 1.0
    %v1005 = vrcp.pop %v1004
    %v1006 = vmul.f32 1.0, %v1005
    %v1007 = vtanh.pop %v993
    %v1008 = vxor.u32 %v993, 2147483648
    %v1009 = vmul.f32 %v1008, 1.442695
    %v1010 = vpow.pop %v1009
    %v1011 = vadd.f32 %v1010, 1.0
    %v1012 = vrcp.pop %v1011
    %v1013 = vmul.f32 1.0, %v1012
    %v1014 = vxor.u32 %v999, 2147483648
    %v1015 = vmul.f32 %v1014, 1.442695
    %v1016 = vpow.pop %v1015
    %v1017 = vadd.f32 %v1016, 1.0
    %v1018 = vrcp.pop %v1017
    %v1019 = vmul.f32 1.0, %v1018
    %v1020 = vtanh.pop %v1000
    %v1021 = vxor.u32 %v1000, 2147483648
    %v1022 = vmul.f32 %v1021, 1.442695
    %v1023 = vpow.pop %v1022
    %v1024 = vadd.f32 %v1023, 1.0
    %v1025 = vrcp.pop %v1024
    %v1026 = vmul.f32 1.0, %v1025
    %v1027 = vmul.f32 %v1006, %v887
    %v1028 = vmul.f32 %v1006, %v1007
    %1030 = vrot.lane.b32.xlu0 %v1028, 64
    %v1031 = vpop.permute.xlu0 %1030
    %v1033 = vadd.f32 %v1027, %v1031
    %v1034 = vmul.f32 %v1019, %v894
    %v1035 = vmul.f32 %v1019, %v1020
    %1037 = vrot.lane.b32.xlu0 %v1035, 64
    %v1038 = vpop.permute.xlu0 %1037
    %v1040 = vadd.f32 %v1034, %v1038
    %v1041 = vtanh.pop %v1033
    %v1042 = vmul.f32 %v1013, %v1041
    %v1043 = vtanh.pop %v1040
    %v1044 = vmul.f32 %v1026, %v1043
    %1046 = vrot.lane.b32.xlu0 %v1042, 64
    %v1047 = vpop.permute.xlu0 %1046
    %v1049 = vsel %vm442, %v1047, %v1044
    %v1050 = vpack.c.bf16 %v1049, %v1049
    %1051 = vmatprep.subr.bf16.mxu0 %v570
    %1052 = vmatpush1.bf16.msra.mxu0 %v569
    %1053 = vmatprep.subr.bf16.mxu0 %v566
    %1054 = vmatpush1.bf16.msra.mxu0 %v565
    %1055 = vmatprep.subr.bf16.mxu0 %v562
    %1056 = vmatpush1.bf16.msra.mxu0 %v561
    %1057 = vmatprep.subr.bf16.mxu0 %v558
    %1058 = vmatpush1.bf16.msra.mxu0 %v557
    %1059 = vmatprep.subr.bf16.mxu0 %v554
    %1060 = vmatpush1.bf16.msra.mxu0 %v553
    %1061 = vmatprep.subr.bf16.mxu0 %v550
    %1062 = vmatpush1.bf16.msra.mxu0 %v549
    %1063 = vmatprep.subr.bf16.mxu0 %v546
    %1064 = vmatpush1.bf16.msra.mxu0 %v545
    %1065 = vmatprep.subr.bf16.mxu0 %v542
    %1066 = vmatpush1.bf16.msra.mxu0 %v541
    %1067 = vmatprep.subr.bf16.mxu0 0
    %1068 = vmatpush2.bf16.msra.mxu0 0
    %1069 = vmatprep.subr.bf16.mxu0 0
    %1070 = vmatpush2.bf16.msra.mxu0 0
    %1071 = vmatprep.subr.bf16.mxu0 0
    %1072 = vmatpush2.bf16.msra.mxu0 0
    %1073 = vmatprep.subr.bf16.mxu0 0
    %1074 = vmatpush2.bf16.msra.mxu0 0
    %1075 = vmatprep.subr.bf16.mxu0 0
    %1076 = vmatpush2.bf16.msra.mxu0 0
    %1077 = vmatprep.subr.bf16.mxu0 0
    %1078 = vmatpush2.bf16.msra.mxu0 0
    %1079 = vmatprep.subr.bf16.mxu0 0
    %1080 = vmatpush2.bf16.msra.mxu0 0
    %1081 = vmatprep.subr.bf16.mxu0 0
    %1082 = vmatpush2.bf16.msra.mxu0 0
    %1083 = vmatprep.mubr.bf16.mxu0 0
    %1084 = vmatmul.mubr.bf16.gmra.mxu0 %v1050
    %v1085 = vpop.f32.mrf.mxu0
    %v1086 = vadd.f32 0.0, %v1085
    %v1087 = vpop.f32.mrf.mxu0
    %v1088 = vadd.f32 0.0, %v1087
    %v1089 = vpop.f32.mrf.mxu0
    %v1090 = vpop.f32.mrf.mxu0
    %1091 = vdwg.mxu0
    %1092 = vmatprep.subr.bf16.mxu0 %v572
    %1093 = vmatpush1.bf16.msra.mxu0 %v571
    %1094 = vmatprep.subr.bf16.mxu0 %v568
    %1095 = vmatpush1.bf16.msra.mxu0 %v567
    %1096 = vmatprep.subr.bf16.mxu0 %v564
    %1097 = vmatpush1.bf16.msra.mxu0 %v563
    %1098 = vmatprep.subr.bf16.mxu0 %v560
    %1099 = vmatpush1.bf16.msra.mxu0 %v559
    %1100 = vmatprep.subr.bf16.mxu0 %v556
    %1101 = vmatpush1.bf16.msra.mxu0 %v555
    %1102 = vmatprep.subr.bf16.mxu0 %v552
    %1103 = vmatpush1.bf16.msra.mxu0 %v551
    %1104 = vmatprep.subr.bf16.mxu0 %v548
    %1105 = vmatpush1.bf16.msra.mxu0 %v547
    %1106 = vmatprep.subr.bf16.mxu0 %v544
    %1107 = vmatpush1.bf16.msra.mxu0 %v543
    %1108 = vmatprep.subr.bf16.mxu0 0
    %1109 = vmatpush2.bf16.msra.mxu0 0
    %1110 = vmatprep.subr.bf16.mxu0 0
    %1111 = vmatpush2.bf16.msra.mxu0 0
    %1112 = vmatprep.subr.bf16.mxu0 0
    %1113 = vmatpush2.bf16.msra.mxu0 0
    %1114 = vmatprep.subr.bf16.mxu0 0
    %1115 = vmatpush2.bf16.msra.mxu0 0
    %1116 = vmatprep.subr.bf16.mxu0 0
    %1117 = vmatpush2.bf16.msra.mxu0 0
    %1118 = vmatprep.subr.bf16.mxu0 0
    %1119 = vmatpush2.bf16.msra.mxu0 0
    %1120 = vmatprep.subr.bf16.mxu0 0
    %1121 = vmatpush2.bf16.msra.mxu0 0
    %1122 = vmatprep.subr.bf16.mxu0 0
    %1123 = vmatpush2.bf16.msra.mxu0 0
    %1124 = vmatprep.mubr.bf16.mxu0 0
    %1125 = vmatmul.mubr.bf16.gmra.mxu0 %v1050
    %v1126 = vpop.f32.mrf.mxu0
    %v1127 = vadd.f32 0.0, %v1126
    %v1128 = vpop.f32.mrf.mxu0
    %v1129 = vadd.f32 0.0, %v1128
    %v1130 = vpop.f32.mrf.mxu0
    %v1131 = vpop.f32.mrf.mxu0
    %1132 = vdwg.mxu0
    %s1133 = smul.u32 3, 2
    %s1134 = smul.addr %s1133, 8
    %s1135 = scalar_lea.vmem [#allocation2], %s1134
    %v1136 = vld [vmem:[%s1135] sm:$0xff]
    %v1137 = vld [vmem:[%s1135 + $0x8] sm:$0xff]
    %v1138 = vadd.f32 %v1136, %v1086
    %v1139 = vadd.f32 %v1137, %v1088
    %s1140 = smul.u32 4, 2
    %s1141 = smul.addr %s1140, 8
    %s1142 = scalar_lea.vmem [#allocation3], %s1141
    %v1143 = vld [vmem:[%s1142] sm:$0xff]
    %v1144 = vld [vmem:[%s1142 + $0x8] sm:$0xff]
    %v1145 = vadd.f32 %v1143, %v1127
    %v1146 = vadd.f32 %v1144, %v1129
    %v1147 = vxor.u32 %v1138, 2147483648
    %v1148 = vmul.f32 %v1147, 1.442695
    %v1149 = vpow.pop %v1148
    %v1150 = vadd.f32 %v1149, 1.0
    %v1151 = vrcp.pop %v1150
    %v1152 = vmul.f32 1.0, %v1151
    %v1153 = vtanh.pop %v1139
    %v1154 = vxor.u32 %v1139, 2147483648
    %v1155 = vmul.f32 %v1154, 1.442695
    %v1156 = vpow.pop %v1155
    %v1157 = vadd.f32 %v1156, 1.0
    %v1158 = vrcp.pop %v1157
    %v1159 = vmul.f32 1.0, %v1158
    %v1160 = vxor.u32 %v1145, 2147483648
    %v1161 = vmul.f32 %v1160, 1.442695
    %v1162 = vpow.pop %v1161
    %v1163 = vadd.f32 %v1162, 1.0
    %v1164 = vrcp.pop %v1163
    %v1165 = vmul.f32 1.0, %v1164
    %v1166 = vtanh.pop %v1146
    %v1167 = vxor.u32 %v1146, 2147483648
    %v1168 = vmul.f32 %v1167, 1.442695
    %v1169 = vpow.pop %v1168
    %v1170 = vadd.f32 %v1169, 1.0
    %v1171 = vrcp.pop %v1170
    %v1172 = vmul.f32 1.0, %v1171
    %v1173 = vmul.f32 %v1152, %v1033
    %v1174 = vmul.f32 %v1152, %v1153
    %1176 = vrot.lane.b32.xlu0 %v1174, 64
    %v1177 = vpop.permute.xlu0 %1176
    %v1179 = vadd.f32 %v1173, %v1177
    %v1180 = vmul.f32 %v1165, %v1040
    %v1181 = vmul.f32 %v1165, %v1166
    %1183 = vrot.lane.b32.xlu0 %v1181, 64
    %v1184 = vpop.permute.xlu0 %1183
    %v1186 = vadd.f32 %v1180, %v1184
    %v1187 = vtanh.pop %v1179
    %v1188 = vmul.f32 %v1159, %v1187
    %v1189 = vtanh.pop %v1186
    %v1190 = vmul.f32 %v1172, %v1189
    %1192 = vrot.lane.b32.xlu0 %v1188, 64
    %v1193 = vpop.permute.xlu0 %1192
    %v1195 = vsel %vm442, %v1193, %v1190
    %v1196 = vpack.c.bf16 %v1195, %v1195
    %1197 = vmatprep.subr.bf16.mxu0 %v570
    %1198 = vmatpush1.bf16.msra.mxu0 %v569
    %1199 = vmatprep.subr.bf16.mxu0 %v566
    %1200 = vmatpush1.bf16.msra.mxu0 %v565
    %1201 = vmatprep.subr.bf16.mxu0 %v562
    %1202 = vmatpush1.bf16.msra.mxu0 %v561
    %1203 = vmatprep.subr.bf16.mxu0 %v558
    %1204 = vmatpush1.bf16.msra.mxu0 %v557
    %1205 = vmatprep.subr.bf16.mxu0 %v554
    %1206 = vmatpush1.bf16.msra.mxu0 %v553
    %1207 = vmatprep.subr.bf16.mxu0 %v550
    %1208 = vmatpush1.bf16.msra.mxu0 %v549
    %1209 = vmatprep.subr.bf16.mxu0 %v546
    %1210 = vmatpush1.bf16.msra.mxu0 %v545
    %1211 = vmatprep.subr.bf16.mxu0 %v542
    %1212 = vmatpush1.bf16.msra.mxu0 %v541
    %1213 = vmatprep.subr.bf16.mxu0 0
    %1214 = vmatpush2.bf16.msra.mxu0 0
    %1215 = vmatprep.subr.bf16.mxu0 0
    %1216 = vmatpush2.bf16.msra.mxu0 0
    %1217 = vmatprep.subr.bf16.mxu0 0
    %1218 = vmatpush2.bf16.msra.mxu0 0
    %1219 = vmatprep.subr.bf16.mxu0 0
    %1220 = vmatpush2.bf16.msra.mxu0 0
    %1221 = vmatprep.subr.bf16.mxu0 0
    %1222 = vmatpush2.bf16.msra.mxu0 0
    %1223 = vmatprep.subr.bf16.mxu0 0
    %1224 = vmatpush2.bf16.msra.mxu0 0
    %1225 = vmatprep.subr.bf16.mxu0 0
    %1226 = vmatpush2.bf16.msra.mxu0 0
    %1227 = vmatprep.subr.bf16.mxu0 0
    %1228 = vmatpush2.bf16.msra.mxu0 0
    %1229 = vmatprep.mubr.bf16.mxu0 0
    %1230 = vmatmul.mubr.bf16.gmra.mxu0 %v1196
    %v1231 = vpop.f32.mrf.mxu0
    %v1232 = vadd.f32 0.0, %v1231
    %v1233 = vpop.f32.mrf.mxu0
    %v1234 = vadd.f32 0.0, %v1233
    %v1235 = vpop.f32.mrf.mxu0
    %v1236 = vpop.f32.mrf.mxu0
    %1237 = vdwg.mxu0
    %1238 = vmatprep.subr.bf16.mxu0 %v572
    %1239 = vmatpush1.bf16.msra.mxu0 %v571
    %1240 = vmatprep.subr.bf16.mxu0 %v568
    %1241 = vmatpush1.bf16.msra.mxu0 %v567
    %1242 = vmatprep.subr.bf16.mxu0 %v564
    %1243 = vmatpush1.bf16.msra.mxu0 %v563
    %1244 = vmatprep.subr.bf16.mxu0 %v560
    %1245 = vmatpush1.bf16.msra.mxu0 %v559
    %1246 = vmatprep.subr.bf16.mxu0 %v556
    %1247 = vmatpush1.bf16.msra.mxu0 %v555
    %1248 = vmatprep.subr.bf16.mxu0 %v552
    %1249 = vmatpush1.bf16.msra.mxu0 %v551
    %1250 = vmatprep.subr.bf16.mxu0 %v548
    %1251 = vmatpush1.bf16.msra.mxu0 %v547
    %1252 = vmatprep.subr.bf16.mxu0 %v544
    %1253 = vmatpush1.bf16.msra.mxu0 %v543
    %1254 = vmatprep.subr.bf16.mxu0 0
    %1255 = vmatpush2.bf16.msra.mxu0 0
    %1256 = vmatprep.subr.bf16.mxu0 0
    %1257 = vmatpush2.bf16.msra.mxu0 0
    %1258 = vmatprep.subr.bf16.mxu0 0
    %1259 = vmatpush2.bf16.msra.mxu0 0
    %1260 = vmatprep.subr.bf16.mxu0 0
    %1261 = vmatpush2.bf16.msra.mxu0 0
    %1262 = vmatprep.subr.bf16.mxu0 0
    %1263 = vmatpush2.bf16.msra.mxu0 0
    %1264 = vmatprep.subr.bf16.mxu0 0
    %1265 = vmatpush2.bf16.msra.mxu0 0
    %1266 = vmatprep.subr.bf16.mxu0 0
    %1267 = vmatpush2.bf16.msra.mxu0 0
    %1268 = vmatprep.subr.bf16.mxu0 0
    %1269 = vmatpush2.bf16.msra.mxu0 0
    %1270 = vmatprep.mubr.bf16.mxu0 0
    %1271 = vmatmul.mubr.bf16.gmra.mxu0 %v1196
    %v1272 = vpop.f32.mrf.mxu0
    %v1273 = vadd.f32 0.0, %v1272
    %v1274 = vpop.f32.mrf.mxu0
    %v1275 = vadd.f32 0.0, %v1274
    %v1276 = vpop.f32.mrf.mxu0
    %v1277 = vpop.f32.mrf.mxu0
    %1278 = vdwg.mxu0
    %s1279 = smul.addr %s1140, 8
    %s1280 = scalar_lea.vmem [#allocation2], %s1279
    %v1281 = vld [vmem:[%s1280] sm:$0xff]
    %v1282 = vld [vmem:[%s1280 + $0x8] sm:$0xff]
    %v1283 = vadd.f32 %v1281, %v1232
    %v1284 = vadd.f32 %v1282, %v1234
    %s1285 = smul.addr %s1133, 8
    %s1286 = scalar_lea.vmem [#allocation3], %s1285
    %v1287 = vld [vmem:[%s1286] sm:$0xff]
    %v1288 = vld [vmem:[%s1286 + $0x8] sm:$0xff]
    %v1289 = vadd.f32 %v1287, %v1273
    %v1290 = vadd.f32 %v1288, %v1275
    %v1291 = vxor.u32 %v1283, 2147483648
    %v1292 = vmul.f32 %v1291, 1.442695
    %v1293 = vpow.pop %v1292
    %v1294 = vadd.f32 %v1293, 1.0
    %v1295 = vrcp.pop %v1294
    %v1296 = vmul.f32 1.0, %v1295
    %v1297 = vtanh.pop %v1284
    %v1298 = vxor.u32 %v1284, 2147483648
    %v1299 = vmul.f32 %v1298, 1.442695
    %v1300 = vpow.pop %v1299
    %v1301 = vadd.f32 %v1300, 1.0
    %v1302 = vrcp.pop %v1301
    %v1303 = vmul.f32 1.0, %v1302
    %v1304 = vxor.u32 %v1289, 2147483648
    %v1305 = vmul.f32 %v1304, 1.442695
    %v1306 = vpow.pop %v1305
    %v1307 = vadd.f32 %v1306, 1.0
    %v1308 = vrcp.pop %v1307
    %v1309 = vmul.f32 1.0, %v1308
    %v1310 = vtanh.pop %v1290
    %v1311 = vxor.u32 %v1290, 2147483648
    %v1312 = vmul.f32 %v1311, 1.442695
    %v1313 = vpow.pop %v1312
    %v1314 = vadd.f32 %v1313, 1.0
    %v1315 = vrcp.pop %v1314
    %v1316 = vmul.f32 1.0, %v1315
    %v1317 = vmul.f32 %v1296, %v1179
    %v1318 = vmul.f32 %v1296, %v1297
    %1320 = vrot.lane.b32.xlu0 %v1318, 64
    %v1321 = vpop.permute.xlu0 %1320
    %v1323 = vadd.f32 %v1317, %v1321
    %v1324 = vmul.f32 %v1309, %v1186
    %v1325 = vmul.f32 %v1309, %v1310
    %1327 = vrot.lane.b32.xlu0 %v1325, 64
    %v1328 = vpop.permute.xlu0 %1327
    %v1330 = vadd.f32 %v1324, %v1328
    %v1331 = vtanh.pop %v1323
    %v1332 = vmul.f32 %v1303, %v1331
    %v1333 = vtanh.pop %v1330
    %v1334 = vmul.f32 %v1316, %v1333
    %1336 = vrot.lane.b32.xlu0 %v1332, 64
    %v1337 = vpop.permute.xlu0 %1336
    %v1339 = vsel %vm442, %v1337, %v1334
    %v1340 = vpack.c.bf16 %v1339, %v1339
    %1341 = vmatprep.subr.bf16.mxu0 %v570
    %1342 = vmatpush1.bf16.msra.mxu0 %v569
    %1343 = vmatprep.subr.bf16.mxu0 %v566
    %1344 = vmatpush1.bf16.msra.mxu0 %v565
    %1345 = vmatprep.subr.bf16.mxu0 %v562
    %1346 = vmatpush1.bf16.msra.mxu0 %v561
    %1347 = vmatprep.subr.bf16.mxu0 %v558
    %1348 = vmatpush1.bf16.msra.mxu0 %v557
    %1349 = vmatprep.subr.bf16.mxu0 %v554
    %1350 = vmatpush1.bf16.msra.mxu0 %v553
    %1351 = vmatprep.subr.bf16.mxu0 %v550
    %1352 = vmatpush1.bf16.msra.mxu0 %v549
    %1353 = vmatprep.subr.bf16.mxu0 %v546
    %1354 = vmatpush1.bf16.msra.mxu0 %v545
    %1355 = vmatprep.subr.bf16.mxu0 %v542
    %1356 = vmatpush1.bf16.msra.mxu0 %v541
    %1357 = vmatprep.subr.bf16.mxu0 0
    %1358 = vmatpush2.bf16.msra.mxu0 0
    %1359 = vmatprep.subr.bf16.mxu0 0
    %1360 = vmatpush2.bf16.msra.mxu0 0
    %1361 = vmatprep.subr.bf16.mxu0 0
    %1362 = vmatpush2.bf16.msra.mxu0 0
    %1363 = vmatprep.subr.bf16.mxu0 0
    %1364 = vmatpush2.bf16.msra.mxu0 0
    %1365 = vmatprep.subr.bf16.mxu0 0
    %1366 = vmatpush2.bf16.msra.mxu0 0
    %1367 = vmatprep.subr.bf16.mxu0 0
    %1368 = vmatpush2.bf16.msra.mxu0 0
    %1369 = vmatprep.subr.bf16.mxu0 0
    %1370 = vmatpush2.bf16.msra.mxu0 0
    %1371 = vmatprep.subr.bf16.mxu0 0
    %1372 = vmatpush2.bf16.msra.mxu0 0
    %1373 = vmatprep.mubr.bf16.mxu0 0
    %1374 = vmatmul.mubr.bf16.gmra.mxu0 %v1340
    %v1375 = vpop.f32.mrf.mxu0
    %v1376 = vadd.f32 0.0, %v1375
    %v1377 = vpop.f32.mrf.mxu0
    %v1378 = vadd.f32 0.0, %v1377
    %v1379 = vpop.f32.mrf.mxu0
    %v1380 = vpop.f32.mrf.mxu0
    %1381 = vdwg.mxu0
    %1382 = vmatprep.subr.bf16.mxu0 %v572
    %1383 = vmatpush1.bf16.msra.mxu0 %v571
    %1384 = vmatprep.subr.bf16.mxu0 %v568
    %1385 = vmatpush1.bf16.msra.mxu0 %v567
    %1386 = vmatprep.subr.bf16.mxu0 %v564
    %1387 = vmatpush1.bf16.msra.mxu0 %v563
    %1388 = vmatprep.subr.bf16.mxu0 %v560
    %1389 = vmatpush1.bf16.msra.mxu0 %v559
    %1390 = vmatprep.subr.bf16.mxu0 %v556
    %1391 = vmatpush1.bf16.msra.mxu0 %v555
    %1392 = vmatprep.subr.bf16.mxu0 %v552
    %1393 = vmatpush1.bf16.msra.mxu0 %v551
    %1394 = vmatprep.subr.bf16.mxu0 %v548
    %1395 = vmatpush1.bf16.msra.mxu0 %v547
    %1396 = vmatprep.subr.bf16.mxu0 %v544
    %1397 = vmatpush1.bf16.msra.mxu0 %v543
    %1398 = vmatprep.subr.bf16.mxu0 0
    %1399 = vmatpush2.bf16.msra.mxu0 0
    %1400 = vmatprep.subr.bf16.mxu0 0
    %1401 = vmatpush2.bf16.msra.mxu0 0
    %1402 = vmatprep.subr.bf16.mxu0 0
    %1403 = vmatpush2.bf16.msra.mxu0 0
    %1404 = vmatprep.subr.bf16.mxu0 0
    %1405 = vmatpush2.bf16.msra.mxu0 0
    %1406 = vmatprep.subr.bf16.mxu0 0
    %1407 = vmatpush2.bf16.msra.mxu0 0
    %1408 = vmatprep.subr.bf16.mxu0 0
    %1409 = vmatpush2.bf16.msra.mxu0 0
    %1410 = vmatprep.subr.bf16.mxu0 0
    %1411 = vmatpush2.bf16.msra.mxu0 0
    %1412 = vmatprep.subr.bf16.mxu0 0
    %1413 = vmatpush2.bf16.msra.mxu0 0
    %1414 = vmatprep.mubr.bf16.mxu0 0
    %1415 = vmatmul.mubr.bf16.gmra.mxu0 %v1340
    %v1416 = vpop.f32.mrf.mxu0
    %v1417 = vadd.f32 0.0, %v1416
    %v1418 = vpop.f32.mrf.mxu0
    %v1419 = vadd.f32 0.0, %v1418
    %v1420 = vpop.f32.mrf.mxu0
    %v1421 = vpop.f32.mrf.mxu0
    %1422 = vdwg.mxu0
    %s1423 = smul.addr %s994, 8
    %s1424 = scalar_lea.vmem [#allocation2], %s1423
    %v1425 = vld [vmem:[%s1424] sm:$0xff]
    %v1426 = vld [vmem:[%s1424 + $0x8] sm:$0xff]
    %v1427 = vadd.f32 %v1425, %v1376
    %v1428 = vadd.f32 %v1426, %v1378
    %s1429 = smul.addr %s987, 8
    %s1430 = scalar_lea.vmem [#allocation3], %s1429
    %v1431 = vld [vmem:[%s1430] sm:$0xff]
    %v1432 = vld [vmem:[%s1430 + $0x8] sm:$0xff]
    %v1433 = vadd.f32 %v1431, %v1417
    %v1434 = vadd.f32 %v1432, %v1419
    %v1435 = vxor.u32 %v1427, 2147483648
    %v1436 = vmul.f32 %v1435, 1.442695
    %v1437 = vpow.pop %v1436
    %v1438 = vadd.f32 %v1437, 1.0
    %v1439 = vrcp.pop %v1438
    %v1440 = vmul.f32 1.0, %v1439
    %v1441 = vtanh.pop %v1428
    %v1442 = vxor.u32 %v1428, 2147483648
    %v1443 = vmul.f32 %v1442, 1.442695
    %v1444 = vpow.pop %v1443
    %v1445 = vadd.f32 %v1444, 1.0
    %v1446 = vrcp.pop %v1445
    %v1447 = vmul.f32 1.0, %v1446
    %v1448 = vxor.u32 %v1433, 2147483648
    %v1449 = vmul.f32 %v1448, 1.442695
    %v1450 = vpow.pop %v1449
    %v1451 = vadd.f32 %v1450, 1.0
    %v1452 = vrcp.pop %v1451
    %v1453 = vmul.f32 1.0, %v1452
    %v1454 = vtanh.pop %v1434
    %v1455 = vxor.u32 %v1434, 2147483648
    %v1456 = vmul.f32 %v1455, 1.442695
    %v1457 = vpow.pop %v1456
    %v1458 = vadd.f32 %v1457, 1.0
    %v1459 = vrcp.pop %v1458
    %v1460 = vmul.f32 1.0, %v1459
    %v1461 = vmul.f32 %v1440, %v1323
    %v1462 = vmul.f32 %v1440, %v1441
    %1464 = vrot.lane.b32.xlu0 %v1462, 64
    %v1465 = vpop.permute.xlu0 %1464
    %v1467 = vadd.f32 %v1461, %v1465
    %v1468 = vmul.f32 %v1453, %v1330
    %v1469 = vmul.f32 %v1453, %v1454
    %1471 = vrot.lane.b32.xlu0 %v1469, 64
    %v1472 = vpop.permute.xlu0 %1471
    %v1474 = vadd.f32 %v1468, %v1472
    %v1475 = vtanh.pop %v1467
    %v1476 = vmul.f32 %v1447, %v1475
    %v1477 = vtanh.pop %v1474
    %v1478 = vmul.f32 %v1460, %v1477
    %1480 = vrot.lane.b32.xlu0 %v1476, 64
    %v1481 = vpop.permute.xlu0 %1480
    %v1483 = vsel %vm442, %v1481, %v1478
    %v1484 = vpack.c.bf16 %v1483, %v1483
    %1485 = vmatprep.subr.bf16.mxu0 %v570
    %1486 = vmatpush1.bf16.msra.mxu0 %v569
    %1487 = vmatprep.subr.bf16.mxu0 %v566
    %1488 = vmatpush1.bf16.msra.mxu0 %v565
    %1489 = vmatprep.subr.bf16.mxu0 %v562
    %1490 = vmatpush1.bf16.msra.mxu0 %v561
    %1491 = vmatprep.subr.bf16.mxu0 %v558
    %1492 = vmatpush1.bf16.msra.mxu0 %v557
    %1493 = vmatprep.subr.bf16.mxu0 %v554
    %1494 = vmatpush1.bf16.msra.mxu0 %v553
    %1495 = vmatprep.subr.bf16.mxu0 %v550
    %1496 = vmatpush1.bf16.msra.mxu0 %v549
    %1497 = vmatprep.subr.bf16.mxu0 %v546
    %1498 = vmatpush1.bf16.msra.mxu0 %v545
    %1499 = vmatprep.subr.bf16.mxu0 %v542
    %1500 = vmatpush1.bf16.msra.mxu0 %v541
    %1501 = vmatprep.subr.bf16.mxu0 0
    %1502 = vmatpush2.bf16.msra.mxu0 0
    %1503 = vmatprep.subr.bf16.mxu0 0
    %1504 = vmatpush2.bf16.msra.mxu0 0
    %1505 = vmatprep.subr.bf16.mxu0 0
    %1506 = vmatpush2.bf16.msra.mxu0 0
    %1507 = vmatprep.subr.bf16.mxu0 0
    %1508 = vmatpush2.bf16.msra.mxu0 0
    %1509 = vmatprep.subr.bf16.mxu0 0
    %1510 = vmatpush2.bf16.msra.mxu0 0
    %1511 = vmatprep.subr.bf16.mxu0 0
    %1512 = vmatpush2.bf16.msra.mxu0 0
    %1513 = vmatprep.subr.bf16.mxu0 0
    %1514 = vmatpush2.bf16.msra.mxu0 0
    %1515 = vmatprep.subr.bf16.mxu0 0
    %1516 = vmatpush2.bf16.msra.mxu0 0
    %1517 = vmatprep.mubr.bf16.mxu0 0
    %1518 = vmatmul.mubr.bf16.gmra.mxu0 %v1484
    %v1519 = vpop.f32.mrf.mxu0
    %v1520 = vadd.f32 0.0, %v1519
    %v1521 = vpop.f32.mrf.mxu0
    %v1522 = vadd.f32 0.0, %v1521
    %v1523 = vpop.f32.mrf.mxu0
    %v1524 = vpop.f32.mrf.mxu0
    %1525 = vdwg.mxu0
    %1526 = vmatprep.subr.bf16.mxu0 %v572
    %1527 = vmatpush1.bf16.msra.mxu0 %v571
    %1528 = vmatprep.subr.bf16.mxu0 %v568
    %1529 = vmatpush1.bf16.msra.mxu0 %v567
    %1530 = vmatprep.subr.bf16.mxu0 %v564
    %1531 = vmatpush1.bf16.msra.mxu0 %v563
    %1532 = vmatprep.subr.bf16.mxu0 %v560
    %1533 = vmatpush1.bf16.msra.mxu0 %v559
    %1534 = vmatprep.subr.bf16.mxu0 %v556
    %1535 = vmatpush1.bf16.msra.mxu0 %v555
    %1536 = vmatprep.subr.bf16.mxu0 %v552
    %1537 = vmatpush1.bf16.msra.mxu0 %v551
    %1538 = vmatprep.subr.bf16.mxu0 %v548
    %1539 = vmatpush1.bf16.msra.mxu0 %v547
    %1540 = vmatprep.subr.bf16.mxu0 %v544
    %1541 = vmatpush1.bf16.msra.mxu0 %v543
    %1542 = vmatprep.subr.bf16.mxu0 0
    %1543 = vmatpush2.bf16.msra.mxu0 0
    %1544 = vmatprep.subr.bf16.mxu0 0
    %1545 = vmatpush2.bf16.msra.mxu0 0
    %1546 = vmatprep.subr.bf16.mxu0 0
    %1547 = vmatpush2.bf16.msra.mxu0 0
    %1548 = vmatprep.subr.bf16.mxu0 0
    %1549 = vmatpush2.bf16.msra.mxu0 0
    %1550 = vmatprep.subr.bf16.mxu0 0
    %1551 = vmatpush2.bf16.msra.mxu0 0
    %1552 = vmatprep.subr.bf16.mxu0 0
    %1553 = vmatpush2.bf16.msra.mxu0 0
    %1554 = vmatprep.subr.bf16.mxu0 0
    %1555 = vmatpush2.bf16.msra.mxu0 0
    %1556 = vmatprep.subr.bf16.mxu0 0
    %1557 = vmatpush2.bf16.msra.mxu0 0
    %1558 = vmatprep.mubr.bf16.mxu0 0
    %1559 = vmatmul.mubr.bf16.gmra.mxu0 %v1484
    %v1560 = vpop.f32.mrf.mxu0
    %v1561 = vadd.f32 0.0, %v1560
    %v1562 = vpop.f32.mrf.mxu0
    %v1563 = vadd.f32 0.0, %v1562
    %v1564 = vpop.f32.mrf.mxu0
    %v1565 = vpop.f32.mrf.mxu0
    %1566 = vdwg.mxu0
    %s1567 = smul.addr %s848, 8
    %s1568 = scalar_lea.vmem [#allocation2], %s1567
    %v1569 = vld [vmem:[%s1568] sm:$0xff]
    %v1570 = vld [vmem:[%s1568 + $0x8] sm:$0xff]
    %v1571 = vadd.f32 %v1569, %v1520
    %v1572 = vadd.f32 %v1570, %v1522
    %s1573 = smul.addr %s841, 8
    %s1574 = scalar_lea.vmem [#allocation3], %s1573
    %v1575 = vld [vmem:[%s1574] sm:$0xff]
    %v1576 = vld [vmem:[%s1574 + $0x8] sm:$0xff]
    %v1577 = vadd.f32 %v1575, %v1561
    %v1578 = vadd.f32 %v1576, %v1563
    %v1579 = vxor.u32 %v1571, 2147483648
    %v1580 = vmul.f32 %v1579, 1.442695
    %v1581 = vpow.pop %v1580
    %v1582 = vadd.f32 %v1581, 1.0
    %v1583 = vrcp.pop %v1582
    %v1584 = vmul.f32 1.0, %v1583
    %v1585 = vtanh.pop %v1572
    %v1586 = vxor.u32 %v1572, 2147483648
    %v1587 = vmul.f32 %v1586, 1.442695
    %v1588 = vpow.pop %v1587
    %v1589 = vadd.f32 %v1588, 1.0
    %v1590 = vrcp.pop %v1589
    %v1591 = vmul.f32 1.0, %v1590
    %v1592 = vxor.u32 %v1577, 2147483648
    %v1593 = vmul.f32 %v1592, 1.442695
    %v1594 = vpow.pop %v1593
    %v1595 = vadd.f32 %v1594, 1.0
    %v1596 = vrcp.pop %v1595
    %v1597 = vmul.f32 1.0, %v1596
    %v1598 = vtanh.pop %v1578
    %v1599 = vxor.u32 %v1578, 2147483648
    %v1600 = vmul.f32 %v1599, 1.442695
    %v1601 = vpow.pop %v1600
    %v1602 = vadd.f32 %v1601, 1.0
    %v1603 = vrcp.pop %v1602
    %v1604 = vmul.f32 1.0, %v1603
    %v1605 = vmul.f32 %v1584, %v1467
    %v1606 = vmul.f32 %v1584, %v1585
    %1608 = vrot.lane.b32.xlu0 %v1606, 64
    %v1609 = vpop.permute.xlu0 %1608
    %v1611 = vadd.f32 %v1605, %v1609
    %v1612 = vmul.f32 %v1597, %v1474
    %v1613 = vmul.f32 %v1597, %v1598
    %1615 = vrot.lane.b32.xlu0 %v1613, 64
    %v1616 = vpop.permute.xlu0 %1615
    %v1618 = vadd.f32 %v1612, %v1616
    %v1619 = vtanh.pop %v1611
    %v1620 = vmul.f32 %v1591, %v1619
    %v1621 = vtanh.pop %v1618
    %v1622 = vmul.f32 %v1604, %v1621
    %1624 = vrot.lane.b32.xlu0 %v1620, 64
    %v1625 = vpop.permute.xlu0 %1624
    %v1627 = vsel %vm442, %v1625, %v1622
    %v1628 = vpack.c.bf16 %v1627, %v1627
    %1629 = vmatprep.subr.bf16.mxu0 %v570
    %1630 = vmatpush1.bf16.msra.mxu0 %v569
    %1631 = vmatprep.subr.bf16.mxu0 %v566
    %1632 = vmatpush1.bf16.msra.mxu0 %v565
    %1633 = vmatprep.subr.bf16.mxu0 %v562
    %1634 = vmatpush1.bf16.msra.mxu0 %v561
    %1635 = vmatprep.subr.bf16.mxu0 %v558
    %1636 = vmatpush1.bf16.msra.mxu0 %v557
    %1637 = vmatprep.subr.bf16.mxu0 %v554
    %1638 = vmatpush1.bf16.msra.mxu0 %v553
    %1639 = vmatprep.subr.bf16.mxu0 %v550
    %1640 = vmatpush1.bf16.msra.mxu0 %v549
    %1641 = vmatprep.subr.bf16.mxu0 %v546
    %1642 = vmatpush1.bf16.msra.mxu0 %v545
    %1643 = vmatprep.subr.bf16.mxu0 %v542
    %1644 = vmatpush1.bf16.msra.mxu0 %v541
    %1645 = vmatprep.subr.bf16.mxu0 0
    %1646 = vmatpush2.bf16.msra.mxu0 0
    %1647 = vmatprep.subr.bf16.mxu0 0
    %1648 = vmatpush2.bf16.msra.mxu0 0
    %1649 = vmatprep.subr.bf16.mxu0 0
    %1650 = vmatpush2.bf16.msra.mxu0 0
    %1651 = vmatprep.subr.bf16.mxu0 0
    %1652 = vmatpush2.bf16.msra.mxu0 0
    %1653 = vmatprep.subr.bf16.mxu0 0
    %1654 = vmatpush2.bf16.msra.mxu0 0
    %1655 = vmatprep.subr.bf16.mxu0 0
    %1656 = vmatpush2.bf16.msra.mxu0 0
    %1657 = vmatprep.subr.bf16.mxu0 0
    %1658 = vmatpush2.bf16.msra.mxu0 0
    %1659 = vmatprep.subr.bf16.mxu0 0
    %1660 = vmatpush2.bf16.msra.mxu0 0
    %1661 = vmatprep.mubr.bf16.mxu0 0
    %1662 = vmatmul.mubr.bf16.gmra.mxu0 %v1628
    %v1663 = vpop.f32.mrf.mxu0
    %v1664 = vadd.f32 0.0, %v1663
    %v1665 = vpop.f32.mrf.mxu0
    %v1666 = vadd.f32 0.0, %v1665
    %v1667 = vpop.f32.mrf.mxu0
    %v1668 = vpop.f32.mrf.mxu0
    %1669 = vdwg.mxu0
    %1670 = vmatprep.subr.bf16.mxu0 %v572
    %1671 = vmatpush1.bf16.msra.mxu0 %v571
    %1672 = vmatprep.subr.bf16.mxu0 %v568
    %1673 = vmatpush1.bf16.msra.mxu0 %v567
    %1674 = vmatprep.subr.bf16.mxu0 %v564
    %1675 = vmatpush1.bf16.msra.mxu0 %v563
    %1676 = vmatprep.subr.bf16.mxu0 %v560
    %1677 = vmatpush1.bf16.msra.mxu0 %v559
    %1678 = vmatprep.subr.bf16.mxu0 %v556
    %1679 = vmatpush1.bf16.msra.mxu0 %v555
    %1680 = vmatprep.subr.bf16.mxu0 %v552
    %1681 = vmatpush1.bf16.msra.mxu0 %v551
    %1682 = vmatprep.subr.bf16.mxu0 %v548
    %1683 = vmatpush1.bf16.msra.mxu0 %v547
    %1684 = vmatprep.subr.bf16.mxu0 %v544
    %1685 = vmatpush1.bf16.msra.mxu0 %v543
    %1686 = vmatprep.subr.bf16.mxu0 0
    %1687 = vmatpush2.bf16.msra.mxu0 0
    %1688 = vmatprep.subr.bf16.mxu0 0
    %1689 = vmatpush2.bf16.msra.mxu0 0
    %1690 = vmatprep.subr.bf16.mxu0 0
    %1691 = vmatpush2.bf16.msra.mxu0 0
    %1692 = vmatprep.subr.bf16.mxu0 0
    %1693 = vmatpush2.bf16.msra.mxu0 0
    %1694 = vmatprep.subr.bf16.mxu0 0
    %1695 = vmatpush2.bf16.msra.mxu0 0
    %1696 = vmatprep.subr.bf16.mxu0 0
    %1697 = vmatpush2.bf16.msra.mxu0 0
    %1698 = vmatprep.subr.bf16.mxu0 0
    %1699 = vmatpush2.bf16.msra.mxu0 0
    %1700 = vmatprep.subr.bf16.mxu0 0
    %1701 = vmatpush2.bf16.msra.mxu0 0
    %1702 = vmatprep.mubr.bf16.mxu0 0
    %1703 = vmatmul.mubr.bf16.gmra.mxu0 %v1628
    %v1704 = vpop.f32.mrf.mxu0
    %v1705 = vadd.f32 0.0, %v1704
    %v1706 = vpop.f32.mrf.mxu0
    %v1707 = vadd.f32 0.0, %v1706
    %v1708 = vpop.f32.mrf.mxu0
    %v1709 = vpop.f32.mrf.mxu0
    %1710 = vdwg.mxu0
    %s1711 = smul.addr %s694, 8
    %s1712 = scalar_lea.vmem [#allocation2], %s1711
    %v1713 = vld [vmem:[%s1712] sm:$0xff]
    %v1714 = vld [vmem:[%s1712 + $0x8] sm:$0xff]
    %v1715 = vadd.f32 %v1713, %v1664
    %v1716 = vadd.f32 %v1714, %v1666
    %s1717 = smul.addr %s687, 8
    %s1718 = scalar_lea.vmem [#allocation3], %s1717
    %v1719 = vld [vmem:[%s1718] sm:$0xff]
    %v1720 = vld [vmem:[%s1718 + $0x8] sm:$0xff]
    %v1721 = vadd.f32 %v1719, %v1705
    %v1722 = vadd.f32 %v1720, %v1707
    %v1723 = vxor.u32 %v1715, 2147483648
    %v1724 = vmul.f32 %v1723, 1.442695
    %v1725 = vpow.pop %v1724
    %v1726 = vadd.f32 %v1725, 1.0
    %v1727 = vrcp.pop %v1726
    %v1728 = vmul.f32 1.0, %v1727
    %v1729 = vtanh.pop %v1716
    %v1730 = vxor.u32 %v1716, 2147483648
    %v1731 = vmul.f32 %v1730, 1.442695
    %v1732 = vpow.pop %v1731
    %v1733 = vadd.f32 %v1732, 1.0
    %v1734 = vrcp.pop %v1733
    %v1735 = vmul.f32 1.0, %v1734
    %v1736 = vxor.u32 %v1721, 2147483648
    %v1737 = vmul.f32 %v1736, 1.442695
    %v1738 = vpow.pop %v1737
    %v1739 = vadd.f32 %v1738, 1.0
    %v1740 = vrcp.pop %v1739
    %v1741 = vmul.f32 1.0, %v1740
    %v1742 = vtanh.pop %v1722
    %v1743 = vxor.u32 %v1722, 2147483648
    %v1744 = vmul.f32 %v1743, 1.442695
    %v1745 = vpow.pop %v1744
    %v1746 = vadd.f32 %v1745, 1.0
    %v1747 = vrcp.pop %v1746
    %v1748 = vmul.f32 1.0, %v1747
    %v1749 = vmul.f32 %v1728, %v1611
    %v1750 = vmul.f32 %v1728, %v1729
    %1752 = vrot.lane.b32.xlu0 %v1750, 64
    %v1753 = vpop.permute.xlu0 %1752
    %v1755 = vadd.f32 %v1749, %v1753
    %v1756 = vmul.f32 %v1741, %v1618
    %v1757 = vmul.f32 %v1741, %v1742
    %1759 = vrot.lane.b32.xlu0 %v1757, 64
    %v1760 = vpop.permute.xlu0 %1759
    %v1762 = vadd.f32 %v1756, %v1760
    %v1763 = vtanh.pop %v1755
    %v1764 = vmul.f32 %v1735, %v1763
    %v1765 = vtanh.pop %v1762
    %v1766 = vmul.f32 %v1748, %v1765
    %1768 = vrot.lane.b32.xlu0 %v1764, 64
    %v1769 = vpop.permute.xlu0 %1768
    %1771 = vst.msk [vmem:[#allocation4] sm:$0xff] %vm442, %v1769
    %1773 = vrot.lane.b32.xlu0 %v1766, 64
    %v1774 = vpop.permute.xlu0 %1773
    %1776 = vst.msk [vmem:[#allocation5] sm:$0xff] %vm442, %v1774
    %1778 = vrot.lane.b32.xlu0 %v1755, 64
    %v1779 = vpop.permute.xlu0 %1778
    %1781 = vst.msk [vmem:[#allocation6] sm:$0xff] %vm442, %v1779
    %1783 = vrot.lane.b32.xlu0 %v1762, 64
    %v1784 = vpop.permute.xlu0 %1783
    %1786 = vst.msk [vmem:[#allocation7] sm:$0xff] %vm442, %v1784
    // Predicated region
    $region38: #{tpu_custom_call.1} parent=1 // pred_check
      %p1787 = pneg %p62
    $region39: #{tpu_custom_call.1} parent=1 // pred_check_branch
      %1789 = sbr.rel (%p1787) target = $region41
    $region40: #{tpu_custom_call.1} parent=1 // pred_region
      %v1790 = vsel %vm442, %v1769, %v1766
      %1791 = vst [vmem:[#allocation11] sm:$0xff] %v1790
    $region41: #{tpu_custom_call.1} parent=1 // pred_fallthru
      _
    // Predicated region
    $region42: #{tpu_custom_call.1} parent=1 // pred_check
      _
    $region43: #{tpu_custom_call.1} parent=1 // pred_check_branch
      %1793 = sbr.rel (0) target = $region45
    $region44: #{tpu_custom_call.1} parent=1 // pred_region
      %s1795 = ssub.s32 128, 128
      %1796 = vsyncadd [#allocation10], %s1795
      %s1798 = sshll.u32 [#allocation11], 4
      %s1799 = int_to_ptr.vmem [resolvable:$true] %s1798
      %1801 = dma.vmem_to_hbm [thread:$0]  %s1799, 128, %s7, [#allocation10]
    $region45: #{tpu_custom_call.1} parent=1 // pred_fallthru
      _
    // Predicated region
    $region46: #{tpu_custom_call.1} parent=1 // pred_check
      _
    $region47: #{tpu_custom_call.1} parent=1 // pred_check_branch
      %1803 = sbr.rel (0) target = $region49
    $region48: #{tpu_custom_call.1} parent=1 // pred_region
      %1804 = dma.done [#allocation10], 128
    $region49: #{tpu_custom_call.1} parent=1 // pred_fallthru
      _
    %1805 = vsyncpa [#allocation9], 1
    %1806 = vsyncpa [#allocation10], 1

</llo_original>
